<compile_context>
chip_gen: v5e
topology: v5e:2x2
jax: 0.10.0
libtpu: 0.0.40
codegen_flags: <defaults>
</compile_context>

<pallas_src>
import jax
import jax.numpy as jnp
from jax.experimental import pallas as pl
from jax.experimental.pallas import tpu as pltpu

SMALL_ADDON_FOR_BCE = 1e-6


# ----------------------------------------------------------------------------
# Fused kernel: RPN head (one MXU matmul) + raw loss partial sums.
# Grid = (batch, HWp-chunk); no cross-step state -> both axes "parallel".
# ----------------------------------------------------------------------------
def _make_fused_kernel(sigma):
    sigma2 = sigma * sigma
    inv_sigma2 = 1.0 / sigma2

    def kernel(w_ref, x_ref, mask_ref, tgt_ref,
               delta_ref, prob_ref, part_ref):
        # ---- RPN head: (16, Cf) @ (Cf, chunk) -> lane-dense (16, chunk) -----
        # rows 0-13 = regression map (delta), rows 14-15 = prob logits.
        out = jnp.dot(w_ref[...], x_ref[...],
                      preferred_element_type=jnp.float32,
                      precision=jax.lax.Precision.HIGHEST)       # (16, chunk)
        delta = out[0:14, :]                                      # aligned @ 0
        logits = out[14:16, :]                                    # tiny slice
        # exact sigmoid: approx reciprocal could push prob above 1.0 and turn
        # log(1 - prob + eps) into NaN.  The tensor is tiny (2 x chunk).
        prob = 1.0 / (1.0 + jnp.exp(-logits))

        delta_ref[...] = delta
        prob_ref[...] = prob

        # ---- classification (BCE-style) raw sums ----------------------------
        masks = mask_ref[...].astype(jnp.float32)                 # (4, chunk)
        pos = masks[0:2, :]
        neg = masks[2:4, :]

        pos_sum = jnp.sum(pos)
        neg_sum = jnp.sum(neg)
        cls_pos_raw = jnp.sum(-pos * jnp.log(prob + SMALL_ADDON_FOR_BCE))
        cls_neg_raw = jnp.sum(-neg * jnp.log(1.0 - prob + SMALL_ADDON_FOR_BCE))

        # ---- regression (smooth-L1) raw sum ----------------------------------
        # pos_equal_one_for_reg is never materialised: each pos channel
        # broadcasts implicitly over its 7 regression channels.
        tgt = tgt_ref[...]                                        # (14, chunk)

        def sl1_half(d, mask_row):
            diffs = d * mask_row                                  # (7, chunk)
            a = jnp.abs(diffs)
            return jnp.sum(jnp.where(a < inv_sigma2,
                                     diffs * diffs * (0.5 * sigma2),
                                     a - 0.5 * inv_sigma2))

        reg_raw = (sl1_half(delta[0:7, :] - tgt[0:7, :], pos[0:1, :]) +
                   sl1_half(delta[7:14, :] - tgt[7:14, :], pos[1:2, :]))

        # ---- per-(batch, chunk) RAW partial sums (finalised in the wrapper) --
        part_ref[0, 0, 0] = pos_sum
        part_ref[0, 0, 1] = neg_sum
        part_ref[0, 0, 2] = cls_pos_raw
        part_ref[0, 0, 3] = cls_neg_raw
        part_ref[0, 0, 4] = reg_raw

    return kernel


def rpn3d_fused_forward(features_cm, masks_cm, targets_cm, w_fused_t,
                        *, sigma, chunk):
    """Fused RPN head + raw loss partial sums.

    features_cm: (N, Cf, HWp) f32 channel-major features, HWp % chunk == 0
    masks_cm:    (N, 4, HWp) bf16; rows 0-1 = pos_equal_one, 2-3 = neg_equal_one
    targets_cm:  (N, 14, HWp) f32
    w_fused_t:   (16, Cf) fused transposed head weight (rows 0-13 delta, 14-15 prob)
    Returns delta (N,14,HWp), prob (N,2,HWp), raw partials (N, n_chunks, 5).
    """
    N, Cf, HWp = features_cm.shape
    assert HWp % chunk == 0 and chunk % 128 == 0
    n_chunks = HWp // chunk

    delta, prob, partials = pl.pallas_call(
        _make_fused_kernel(sigma),
        out_shape=(jax.ShapeDtypeStruct((N, 14, HWp), jnp.float32),
                   jax.ShapeDtypeStruct((N, 2, HWp), jnp.float32),
                   jax.ShapeDtypeStruct((N, n_chunks, 5), jnp.float32)),
        grid_spec=pltpu.PrefetchScalarGridSpec(
            num_scalar_prefetch=0,
            grid=(N, n_chunks),
            in_specs=[
                pl.BlockSpec((16, Cf), lambda b, c: (0, 0)),            # weight
                pl.BlockSpec((None, Cf, chunk), lambda b, c: (b, 0, c)),  # feats
                pl.BlockSpec((None, 4, chunk), lambda b, c: (b, 0, c)),   # pos|neg
                pl.BlockSpec((None, 14, chunk), lambda b, c: (b, 0, c)),  # targets
            ],
            out_specs=(
                pl.BlockSpec((None, 14, chunk), lambda b, c: (b, 0, c)),  # delta
                pl.BlockSpec((None, 2, chunk), lambda b, c: (b, 0, c)),   # prob
                pl.BlockSpec((1, 1, 5), lambda b, c: (b, c, 0),
                             memory_space=pltpu.SMEM),                    # partials
            )),
        compiler_params=pltpu.CompilerParams(
            # every (batch, chunk) step is independent -> fully shardable
            # across TensorCores (v7x megacore) even for N == 1.
            dimension_semantics=("parallel", "parallel")),
    )(w_fused_t, features_cm, masks_cm, targets_cm)
    return delta, prob, partials


# ----------------------------------------------------------------------------
# RPN3D forward (Pallas-backed)
# ----------------------------------------------------------------------------
class RPN3DPallas:
    def __init__(self, cls="Car", alpha=1.5, beta=1.0, sigma=3.0,
                 feat_channels=32, max_chunk=2048):
        self.cls = cls
        self.alpha = float(alpha)
        self.beta = float(beta)
        self.sigma = float(sigma)
        self.feat_channels = feat_channels
        self.max_chunk = max_chunk
        # deterministic head parameters (stand-in for MiddleAndRpn's final
        # 1x1 convs producing the 2-ch prob map and 14-ch regression map).
        kp, kd = jax.random.split(jax.random.PRNGKey(42))
        self.w_prob = 0.1 * jax.random.normal(kp, (feat_channels, 2),
                                              dtype=jnp.float32)
        self.w_delta = 0.1 * jax.random.normal(kd, (feat_channels, 14),
                                               dtype=jnp.float32)
        # fused transposed head weight: rows 0..13 = delta, rows 14..15 = prob
        # (delta first so the big output slice is sublane-aligned).
        self.w_fused_t = jnp.concatenate([self.w_delta.T, self.w_prob.T],
                                         axis=0)                  # (16, Cf)

    @staticmethod
    def _pick_chunk(hw, max_chunk):
        hw128 = ((hw + 127) // 128) * 128
        if hw128 <= max_chunk:
            return hw128, hw128          # single chunk
        hwp = ((hw + max_chunk - 1) // max_chunk) * max_chunk
        return hwp, max_chunk

    def __call__(self, features_nchw, pos_equal_one, neg_equal_one, targets):
        N, Cf, H, W = features_nchw.shape
        HW = H * W
        HWp, chunk = self._pick_chunk(HW, self.max_chunk)
        pad = HWp - HW                    # lane padding is loss-neutral (zeros)

        # TODO(synk): in a real pipeline cal_rpn_target should emit this
        # channel-major padded layout directly; these transposes/pads are pure
        # layout plumbing that re-touches HBM once.
        def to_cm(x_nhwc):
            x = jnp.transpose(x_nhwc, (0, 3, 1, 2)).reshape(N, -1, HW)
            if pad:
                x = jnp.pad(x, ((0, 0), (0, 0), (0, pad)))
            return x

        feats = features_nchw.reshape(N, Cf, HW)
        if pad:
            feats = jnp.pad(feats, ((0, 0), (0, 0), (0, pad)))
        # pack pos(2) + neg(2) into one (N, 4, HWp) bf16 tensor (0/1 exact).
        masks = jnp.concatenate([to_cm(pos_equal_one), to_cm(neg_equal_one)],
                                axis=1).astype(jnp.bfloat16)
        tgt_cm = to_cm(targets)

        delta_cm, prob_cm, partials = rpn3d_fused_forward(
            feats, masks, tgt_cm, self.w_fused_t,
            sigma=self.sigma, chunk=chunk)

        if pad:
            delta_cm = delta_cm[..., :HW]
            prob_cm = prob_cm[..., :HW]
        prob_output = prob_cm.reshape(N, 2, H, W)       # NCHW
        delta_output = delta_cm.reshape(N, 14, H, W)    # NCHW (r_map)

        # ---- finalise the loss from the RAW per-(batch, chunk) partials -----
        sums = jnp.sum(partials, axis=1)                # (N, 5)
        pos_sum = jnp.maximum(sums[:, 0], 1.0)
        neg_sum = jnp.maximum(sums[:, 1], 1.0)
        cls_pos_rec_b = sums[:, 2] / pos_sum
        cls_neg_rec_b = sums[:, 3] / neg_sum
        reg_b = sums[:, 4] / pos_sum

        cls_pos_rec = jnp.sum(cls_pos_rec_b)
        cls_neg_rec = jnp.sum(cls_neg_rec_b)
        cls_loss = jnp.sum(self.alpha * cls_pos_rec_b + self.beta * cls_neg_rec_b)
        reg_loss = jnp.sum(reg_b)
        loss = cls_loss + reg_loss
        return (prob_output, delta_output, loss, cls_loss, reg_loss,
                cls_pos_rec, cls_neg_rec)


# ----------------------------------------------------------------------------
# Pure-JAX reference for verification (NHWC math, mirroring the PyTorch code)
# ----------------------------------------------------------------------------
def reference_loss(prob, delta, pos, neg, targets, alpha, beta, sigma):
    eps = SMALL_ADDON_FOR_BCE
    pos_reg = jnp.concatenate(
        [jnp.tile(pos[..., :1], (1, 1, 1, 7)),
         jnp.tile(pos[..., 1:2], (1, 1, 1, 7))], axis=-1)
    pos_sum = jnp.clip(jnp.sum(pos, axis=(1, 2, 3)).reshape(-1, 1, 1, 1),
                       1.0, None)
    neg_sum = jnp.clip(jnp.sum(neg, axis=(1, 2, 3)).reshape(-1, 1, 1, 1),
                       1.0, None)
    cls_pos = -pos * jnp.log(prob + eps) / pos_sum
    cls_neg = -neg * jnp.log(1.0 - prob + eps) / neg_sum
    cls_loss = jnp.sum(alpha * cls_pos + beta * cls_neg)
    sigma2 = sigma * sigma
    d = delta * pos_reg - targets * pos_reg
    ad = jnp.abs(d)
    sign = (ad < 1.0 / sigma2).astype(jnp.float32)
    sl1 = d * d * 0.5 * sigma2 * sign + (ad - 0.5 / sigma2) * (1.0 - sign)
    reg_loss = jnp.sum(sl1 / pos_sum)
    return (cls_loss + reg_loss, cls_loss, reg_loss,
            jnp.sum(cls_pos), jnp.sum(cls_neg))


if __name__ == "__main__":
    N, H, W, Cf = 2, 16, 16, 32

    key = jax.random.PRNGKey(0)
    k_feat, k_pos, k_neg, k_tgt = jax.random.split(key, 4)

    # synthetic conv-backbone output feature map (NCHW, as PyTorch conv emits)
    features = jax.random.normal(k_feat, (N, Cf, H, W), dtype=jnp.float32)
    # synthetic rpn targets (stand-in for cal_rpn_target), NHWC like numpy
    pos_equal_one = (jax.random.uniform(k_pos, (N, H, W, 2)) < 0.05
                     ).astype(jnp.float32)
    neg_equal_one = ((jax.random.uniform(k_neg, (N, H, W, 2)) < 0.5
                      ).astype(jnp.float32)) * (1.0 - pos_equal_one)
    targets = jax.random.normal(k_tgt, (N, H, W, 14), dtype=jnp.float32)

    model = RPN3DPallas(cls="Car", alpha=1.5, beta=1.0, sigma=3.0,
                        feat_channels=Cf)
    outs = model(features, pos_equal_one, neg_equal_one, targets)
    outs = jax.block_until_ready(outs)
    (prob_output, delta_output, loss, cls_loss, reg_loss,
     cls_pos_rec, cls_neg_rec) = outs

    assert prob_output.shape == (N, 2, H, W)
    assert delta_output.shape == (N, 14, H, W)

    # ---- verify head against plain-JAX matmul (HIGHEST precision in-kernel) --
    feat_flat = features.reshape(N, Cf, H * W)
    logits_ref = jnp.einsum("ncm,cp->npm", feat_flat, model.w_prob,
                            precision=jax.lax.Precision.HIGHEST)
    prob_ref = (1.0 / (1.0 + jnp.exp(-logits_ref))).reshape(N, 2, H, W)
    delta_ref = jnp.einsum("ncm,cd->ndm", feat_flat, model.w_delta,
                           precision=jax.lax.Precision.HIGHEST
                           ).reshape(N, 14, H, W)
    assert jnp.allclose(prob_output, prob_ref, rtol=1e-4, atol=1e-4)
    assert jnp.allclose(delta_output, delta_ref, rtol=1e-4, atol=1e-4)

    # ---- verify loss against pure-JAX reference ------------------------------
    prob_nhwc = jnp.transpose(prob_output, (0, 2, 3, 1))
    delta_nhwc = jnp.transpose(delta_output, (0, 2, 3, 1))
    ref = reference_loss(prob_nhwc, delta_nhwc, pos_equal_one, neg_equal_one,
                         targets, 1.5, 1.0, 3.0)
    got = jnp.stack([loss, cls_loss, reg_loss, cls_pos_rec, cls_neg_rec])
    want = jnp.stack(ref)
    assert jnp.allclose(got, want, rtol=1e-3, atol=1e-3), (got, want)

    print("KERNEL_OK")
</pallas_src>

<mosaic_0001>
module attributes {stable_mosaic.version = 11 : i64} {
  func.func @kernel(%arg0: i32, %arg1: i32, %arg2: memref<16x32xf32, #tpu.memory_space<vmem>>, %arg3: memref<1x32x256xf32, #tpu.memory_space<vmem>>, %arg4: memref<1x4x256xbf16, #tpu.memory_space<vmem>>, %arg5: memref<1x14x256xf32, #tpu.memory_space<vmem>>, %arg6: memref<1x14x256xf32, #tpu.memory_space<vmem>>, %arg7: memref<1x2x256xf32, #tpu.memory_space<vmem>>, %arg8: memref<1x1x5xf32, #tpu.memory_space<smem>>) attributes {dimension_semantics = [#tpu.dimension_semantics<parallel>, #tpu.dimension_semantics<parallel>], iteration_bounds = array<i64: 2, 1>, scalar_prefetch = 0 : i64, scratch_operands = 0 : i64, tpu.core_type = #tpu.core_type<tc>, window_params = [{pipeline_mode = #tpu.pipeline_mode<synchronous>, transform_indices = @transform_0, window_bounds = array<i64: 16, 32>}, {transform_indices = @transform_1, window_bounds = array<i64: 1, 32, 256>}, {transform_indices = @transform_2, window_bounds = array<i64: 1, 4, 256>}, {transform_indices = @transform_3, window_bounds = array<i64: 1, 14, 256>}, {transform_indices = @transform_4, window_bounds = array<i64: 1, 14, 256>}, {transform_indices = @transform_5, window_bounds = array<i64: 1, 2, 256>}, {transform_indices = @transform_6, window_bounds = array<i64: 1, 1, 5>}]} {
    %c0 = arith.constant 0 : index
    %c0_0 = arith.constant 0 : index
    %0 = vector.load %arg2[%c0, %c0_0] : memref<16x32xf32, #tpu.memory_space<vmem>>, vector<16x32xf32>
    %c0_1 = arith.constant 0 : index
    %c0_2 = arith.constant 0 : index
    %c0_3 = arith.constant 0 : index
    %1 = vector.load %arg3[%c0_1, %c0_2, %c0_3] : memref<1x32x256xf32, #tpu.memory_space<vmem>>, vector<1x32x256xf32>
    %2 = vector.shape_cast %1 : vector<1x32x256xf32> to vector<32x256xf32>
    %cst = arith.constant dense<0.000000e+00> : vector<16x256xf32>
    %3 = tpu.matmul %0, %2, %cst {dimension_numbers = #tpu.dot_dimension_numbers<[1], [0], [0], [1], [0, 0, 1, 1], [], []>, precision = #tpu.contract_precision<fp32>} : vector<16x32xf32>, vector<32x256xf32>, vector<16x256xf32> -> vector<16x256xf32>
    %4 = vector.extract_strided_slice %3 {offsets = [0, 0], sizes = [14, 256], strides = [1, 1]} : vector<16x256xf32> to vector<14x256xf32>
    %5 = vector.extract_strided_slice %3 {offsets = [14, 0], sizes = [2, 256], strides = [1, 1]} : vector<16x256xf32> to vector<2x256xf32>
    %cst_4 = arith.constant 0.000000e+00 : f32
    %6 = vector.broadcast %cst_4 : f32 to vector<2x256xf32>
    %7 = arith.subf %6, %5 : vector<2x256xf32>
    %8 = math.exp %7 : vector<2x256xf32>
    %cst_5 = arith.constant 1.000000e+00 : f32
    %9 = vector.broadcast %cst_5 : f32 to vector<2x256xf32>
    %10 = arith.addf %9, %8 : vector<2x256xf32>
    %cst_6 = arith.constant 1.000000e+00 : f32
    %11 = vector.broadcast %cst_6 : f32 to vector<2x256xf32>
    %12 = arith.divf %11, %10 : vector<2x256xf32>
    %c0_7 = arith.constant 0 : index
    %c0_8 = arith.constant 0 : index
    %c0_9 = arith.constant 0 : index
    %13 = vector.load %arg6[%c0_7, %c0_8, %c0_9] : memref<1x14x256xf32, #tpu.memory_space<vmem>>, vector<1x14x256xf32>
    %14 = vector.shape_cast %13 : vector<1x14x256xf32> to vector<14x256xf32>
    %15 = vector.shape_cast %4 : vector<14x256xf32> to vector<1x14x256xf32>
    tpu.vector_store %arg6[%c0_7, %c0_8, %c0_9], %15 {strides = array<i32>} : memref<1x14x256xf32, #tpu.memory_space<vmem>>, vector<1x14x256xf32>,
    %c0_10 = arith.constant 0 : index
    %c0_11 = arith.constant 0 : index
    %c0_12 = arith.constant 0 : index
    %16 = vector.load %arg7[%c0_10, %c0_11, %c0_12] : memref<1x2x256xf32, #tpu.memory_space<vmem>>, vector<1x2x256xf32>
    %17 = vector.shape_cast %16 : vector<1x2x256xf32> to vector<2x256xf32>
    %18 = vector.shape_cast %12 : vector<2x256xf32> to vector<1x2x256xf32>
    tpu.vector_store %arg7[%c0_10, %c0_11, %c0_12], %18 {strides = array<i32>} : memref<1x2x256xf32, #tpu.memory_space<vmem>>, vector<1x2x256xf32>,
    %c0_13 = arith.constant 0 : index
    %c0_14 = arith.constant 0 : index
    %c0_15 = arith.constant 0 : index
    %19 = vector.load %arg4[%c0_13, %c0_14, %c0_15] : memref<1x4x256xbf16, #tpu.memory_space<vmem>>, vector<1x4x256xbf16>
    %20 = vector.shape_cast %19 : vector<1x4x256xbf16> to vector<4x256xbf16>
    %21 = arith.extf %20 : vector<4x256xbf16> to vector<4x256xf32>
    %22 = vector.extract_strided_slice %21 {offsets = [0, 0], sizes = [2, 256], strides = [1, 1]} : vector<4x256xf32> to vector<2x256xf32>
    %23 = vector.extract_strided_slice %21 {offsets = [2, 0], sizes = [2, 256], strides = [1, 1]} : vector<4x256xf32> to vector<2x256xf32>
    %24 = vector.shape_cast %22 : vector<2x256xf32> to vector<1x2x256xf32>
    %cst_16 = arith.constant dense<0.000000e+00> : vector<1xf32>
    %25 = vector.multi_reduction <add>, %24, %cst_16 [1, 2] : vector<1x2x256xf32> to vector<1xf32>
    %26 = vector.shape_cast %25 : vector<1xf32> to vector<1x1x1xf32>
    %27 = vector.extract %26[0, 0, 0] : f32 from vector<1x1x1xf32>
    %28 = vector.shape_cast %23 : vector<2x256xf32> to vector<1x2x256xf32>
    %cst_17 = arith.constant dense<0.000000e+00> : vector<1xf32>
    %29 = vector.multi_reduction <add>, %28, %cst_17 [1, 2] : vector<1x2x256xf32> to vector<1xf32>
    %30 = vector.shape_cast %29 : vector<1xf32> to vector<1x1x1xf32>
    %31 = vector.extract %30[0, 0, 0] : f32 from vector<1x1x1xf32>
    %cst_18 = arith.constant 0.000000e+00 : f32
    %32 = vector.broadcast %cst_18 : f32 to vector<2x256xf32>
    %33 = arith.subf %32, %22 : vector<2x256xf32>
    %cst_19 = arith.constant 9.99999997E-7 : f32
    %34 = vector.broadcast %cst_19 : f32 to vector<2x256xf32>
    %35 = arith.addf %12, %34 : vector<2x256xf32>
    %36 = math.log %35 : vector<2x256xf32>
    %37 = arith.mulf %33, %36 : vector<2x256xf32>
    %38 = vector.shape_cast %37 : vector<2x256xf32> to vector<1x2x256xf32>
    %cst_20 = arith.constant dense<0.000000e+00> : vector<1xf32>
    %39 = vector.multi_reduction <add>, %38, %cst_20 [1, 2] : vector<1x2x256xf32> to vector<1xf32>
    %40 = vector.shape_cast %39 : vector<1xf32> to vector<1x1x1xf32>
    %41 = vector.extract %40[0, 0, 0] : f32 from vector<1x1x1xf32>
    %cst_21 = arith.constant 0.000000e+00 : f32
    %42 = vector.broadcast %cst_21 : f32 to vector<2x256xf32>
    %43 = arith.subf %42, %23 : vector<2x256xf32>
    %cst_22 = arith.constant 1.000000e+00 : f32
    %44 = vector.broadcast %cst_22 : f32 to vector<2x256xf32>
    %45 = arith.subf %44, %12 : vector<2x256xf32>
    %cst_23 = arith.constant 9.99999997E-7 : f32
    %46 = vector.broadcast %cst_23 : f32 to vector<2x256xf32>
    %47 = arith.addf %45, %46 : vector<2x256xf32>
    %48 = math.log %47 : vector<2x256xf32>
    %49 = arith.mulf %43, %48 : vector<2x256xf32>
    %50 = vector.shape_cast %49 : vector<2x256xf32> to vector<1x2x256xf32>
    %cst_24 = arith.constant dense<0.000000e+00> : vector<1xf32>
    %51 = vector.multi_reduction <add>, %50, %cst_24 [1, 2] : vector<1x2x256xf32> to vector<1xf32>
    %52 = vector.shape_cast %51 : vector<1xf32> to vector<1x1x1xf32>
    %53 = vector.extract %52[0, 0, 0] : f32 from vector<1x1x1xf32>
    %c0_25 = arith.constant 0 : index
    %c0_26 = arith.constant 0 : index
    %c0_27 = arith.constant 0 : index
    %54 = vector.load %arg5[%c0_25, %c0_26, %c0_27] : memref<1x14x256xf32, #tpu.memory_space<vmem>>, vector<1x14x256xf32>
    %55 = vector.shape_cast %54 : vector<1x14x256xf32> to vector<14x256xf32>
    %56 = vector.extract_strided_slice %4 {offsets = [0, 0], sizes = [7, 256], strides = [1, 1]} : vector<14x256xf32> to vector<7x256xf32>
    %57 = vector.extract_strided_slice %55 {offsets = [0, 0], sizes = [7, 256], strides = [1, 1]} : vector<14x256xf32> to vector<7x256xf32>
    %58 = arith.subf %56, %57 : vector<7x256xf32>
    %59 = vector.extract_strided_slice %22 {offsets = [0, 0], sizes = [1, 256], strides = [1, 1]} : vector<2x256xf32> to vector<1x256xf32>
    %60 = vector.broadcast %59 : vector<1x256xf32> to vector<7x256xf32>
    %61 = arith.mulf %58, %60 : vector<7x256xf32>
    %62 = math.absf %61 : vector<7x256xf32>
    %cst_28 = arith.constant 0.111111112 : f32
    %63 = vector.broadcast %cst_28 : f32 to vector<7x256xf32>
    %64 = arith.cmpf olt, %62, %63 : vector<7x256xf32>
    %65 = arith.mulf %61, %61 : vector<7x256xf32>
    %cst_29 = arith.constant 4.500000e+00 : f32
    %66 = vector.broadcast %cst_29 : f32 to vector<7x256xf32>
    %67 = arith.mulf %65, %66 : vector<7x256xf32>
    %cst_30 = arith.constant 0.055555556 : f32
    %68 = vector.broadcast %cst_30 : f32 to vector<7x256xf32>
    %69 = arith.subf %62, %68 : vector<7x256xf32>
    %70 = arith.select %64, %67, %69 : vector<7x256xi1>, vector<7x256xf32>
    %71 = vector.shape_cast %70 : vector<7x256xf32> to vector<1x7x256xf32>
    %cst_31 = arith.constant dense<0.000000e+00> : vector<1xf32>
    %72 = vector.multi_reduction <add>, %71, %cst_31 [1, 2] : vector<1x7x256xf32> to vector<1xf32>
    %73 = vector.shape_cast %72 : vector<1xf32> to vector<1x1x1xf32>
    %74 = vector.extract %73[0, 0, 0] : f32 from vector<1x1x1xf32>
    %75 = vector.extract_strided_slice %4 {offsets = [7, 0], sizes = [7, 256], strides = [1, 1]} : vector<14x256xf32> to vector<7x256xf32>
    %76 = vector.extract_strided_slice %55 {offsets = [7, 0], sizes = [7, 256], strides = [1, 1]} : vector<14x256xf32> to vector<7x256xf32>
    %77 = arith.subf %75, %76 : vector<7x256xf32>
    %78 = vector.extract_strided_slice %22 {offsets = [1, 0], sizes = [1, 256], strides = [1, 1]} : vector<2x256xf32> to vector<1x256xf32>
    %79 = vector.broadcast %78 : vector<1x256xf32> to vector<7x256xf32>
    %80 = arith.mulf %77, %79 : vector<7x256xf32>
    %81 = math.absf %80 : vector<7x256xf32>
    %cst_32 = arith.constant 0.111111112 : f32
    %82 = vector.broadcast %cst_32 : f32 to vector<7x256xf32>
    %83 = arith.cmpf olt, %81, %82 : vector<7x256xf32>
    %84 = arith.mulf %80, %80 : vector<7x256xf32>
    %cst_33 = arith.constant 4.500000e+00 : f32
    %85 = vector.broadcast %cst_33 : f32 to vector<7x256xf32>
    %86 = arith.mulf %84, %85 : vector<7x256xf32>
    %cst_34 = arith.constant 0.055555556 : f32
    %87 = vector.broadcast %cst_34 : f32 to vector<7x256xf32>
    %88 = arith.subf %81, %87 : vector<7x256xf32>
    %89 = arith.select %83, %86, %88 : vector<7x256xi1>, vector<7x256xf32>
    %90 = vector.shape_cast %89 : vector<7x256xf32> to vector<1x7x256xf32>
    %cst_35 = arith.constant dense<0.000000e+00> : vector<1xf32>
    %91 = vector.multi_reduction <add>, %90, %cst_35 [1, 2] : vector<1x7x256xf32> to vector<1xf32>
    %92 = vector.shape_cast %91 : vector<1xf32> to vector<1x1x1xf32>
    %93 = vector.extract %92[0, 0, 0] : f32 from vector<1x1x1xf32>
    %94 = arith.addf %74, %93 : f32
    %c0_36 = arith.constant 0 : index
    %c0_37 = arith.constant 0 : index
    %c0_38 = arith.constant 0 : index
    %95 = memref.load %arg8[%c0_36, %c0_37, %c0_38] : memref<1x1x5xf32, #tpu.memory_space<smem>>
    memref.store %27, %arg8[%c0_36, %c0_37, %c0_38] : memref<1x1x5xf32, #tpu.memory_space<smem>>
    %c0_39 = arith.constant 0 : index
    %c0_40 = arith.constant 0 : index
    %c1 = arith.constant 1 : index
    %96 = memref.load %arg8[%c0_39, %c0_40, %c1] : memref<1x1x5xf32, #tpu.memory_space<smem>>
    memref.store %31, %arg8[%c0_39, %c0_40, %c1] : memref<1x1x5xf32, #tpu.memory_space<smem>>
    %c0_41 = arith.constant 0 : index
    %c0_42 = arith.constant 0 : index
    %c2 = arith.constant 2 : index
    %97 = memref.load %arg8[%c0_41, %c0_42, %c2] : memref<1x1x5xf32, #tpu.memory_space<smem>>
    memref.store %41, %arg8[%c0_41, %c0_42, %c2] : memref<1x1x5xf32, #tpu.memory_space<smem>>
    %c0_43 = arith.constant 0 : index
    %c0_44 = arith.constant 0 : index
    %c3 = arith.constant 3 : index
    %98 = memref.load %arg8[%c0_43, %c0_44, %c3] : memref<1x1x5xf32, #tpu.memory_space<smem>>
    memref.store %53, %arg8[%c0_43, %c0_44, %c3] : memref<1x1x5xf32, #tpu.memory_space<smem>>
    %c0_45 = arith.constant 0 : index
    %c0_46 = arith.constant 0 : index
    %c4 = arith.constant 4 : index
    %99 = memref.load %arg8[%c0_45, %c0_46, %c4] : memref<1x1x5xf32, #tpu.memory_space<smem>>
    memref.store %94, %arg8[%c0_45, %c0_46, %c4] : memref<1x1x5xf32, #tpu.memory_space<smem>>
    return
  }
  func.func @transform_0(%arg0: i32, %arg1: i32) -> (i32, i32) {
    %c0_i32 = arith.constant 0 : i32
    %c0_i32_0 = arith.constant 0 : i32
    %c0_i32_1 = arith.constant 0 : i32
    return %c0_i32, %c0_i32_0 : i32, i32
  }
  func.func @transform_1(%arg0: i32, %arg1: i32) -> (i32, i32, i32) {
    %c0_i32 = arith.constant 0 : i32
    %c0_i32_0 = arith.constant 0 : i32
    return %arg0, %c0_i32, %arg1 : i32, i32, i32
  }
  func.func @transform_2(%arg0: i32, %arg1: i32) -> (i32, i32, i32) {
    %c0_i32 = arith.constant 0 : i32
    %c0_i32_0 = arith.constant 0 : i32
    return %arg0, %c0_i32, %arg1 : i32, i32, i32
  }
  func.func @transform_3(%arg0: i32, %arg1: i32) -> (i32, i32, i32) {
    %c0_i32 = arith.constant 0 : i32
    %c0_i32_0 = arith.constant 0 : i32
    return %arg0, %c0_i32, %arg1 : i32, i32, i32
  }
  func.func @transform_4(%arg0: i32, %arg1: i32) -> (i32, i32, i32) {
    %c0_i32 = arith.constant 0 : i32
    %c0_i32_0 = arith.constant 0 : i32
    return %arg0, %c0_i32, %arg1 : i32, i32, i32
  }
  func.func @transform_5(%arg0: i32, %arg1: i32) -> (i32, i32, i32) {
    %c0_i32 = arith.constant 0 : i32
    %c0_i32_0 = arith.constant 0 : i32
    return %arg0, %c0_i32, %arg1 : i32, i32, i32
  }
  func.func @transform_6(%arg0: i32, %arg1: i32) -> (i32, i32, i32) {
    %c0_i32 = arith.constant 0 : i32
    %c0_i32_0 = arith.constant 0 : i32
    return %arg0, %arg1, %c0_i32 : i32, i32, i32
  }
}

</mosaic_0001>

<llo_original>
// kernel: tpu_custom_call.1
$region0: #{tpu_custom_call.1}
  #allocation0 [shape = 'u32[]', space=smem, size = 0x4, offset = 0x4, fixed_abs, tag = 'smem constant byte address 0x4 - core index']
  #allocation1 [shape = 'u32[72,128]{1,0:T(1,128)}', space=vmem, size = 0x9000, scoped, tag = 'internal scratch']
  %s0 = inlined_call_operand.vmem [shape: f32[16,32], index: 0, kind: input, shape index: {}]
  %s1 = inlined_call_operand.hbm [shape: f32[2,32,256], index: 1, kind: input, shape index: {}]
  %s2 = inlined_call_operand.vmem [shape: bf16[2,4,256], index: 2, kind: input, shape index: {}]
  %s3 = inlined_call_operand.vmem [shape: f32[2,14,256], index: 3, kind: input, shape index: {}]
  %s4 = inlined_call_operand.vmem [shape: f32[2,14,256], index: 4, kind: output, shape index: {0}]
  %s5 = inlined_call_operand.hbm [shape: f32[2,2,256], index: 5, kind: output, shape index: {1}]
  %s6 = inlined_call_operand.hbm [shape: f32[2,1,5], index: 6, kind: output, shape index: {2}]
  %7 = xla_tuple %s4, %s5, %s6
  %s8 = sld [smem:[#allocation0]]
  $region69: #{tpu_custom_call.1} parent=0
    _
  %s10 = ssub.s32 1, %s8
  %s11 = scalar_select 0, %s10, %s8
  $region1: #{tpu_custom_call.1} parent=0
    #allocation2 [shape = 'u8[65536]{0}', space=vmem, size = 0x10000, scoped, tag = 'input window, operand 1']
    #allocation3 [shape = 's32[2]{0}', space=sflag, size = 0x8, scoped, tag = 'scoped memory for tpu_custom_call.1']
    #allocation4 [shape = 's32[2]{0}', space=sflag, size = 0x8, scoped, tag = 'scoped memory for tpu_custom_call.1']
    #allocation5 [shape = 's32[2]{0}', space=sflag, size = 0x8, scoped, tag = 'scoped memory for tpu_custom_call.1']
    #allocation6 [shape = 'u8[4096]{0}', space=vmem, size = 0x1000, scoped, tag = 'output window, operand 1']
    #allocation7 [shape = 'u8[1024]{0}', space=smem, size = 0x400, scoped, tag = 'output window, operand 2']
    %12 = vsyncpa [#allocation3], 0
    %s13 = scalar_lea.sflag [#allocation3], 1
    %14 = vsyncpa %s13, 0
    %15 = vsyncpa [#allocation4], 0
    %s16 = scalar_lea.sflag [#allocation4], 1
    %17 = vsyncpa %s16, 0
    %18 = vsyncpa [#allocation5], 0
    %s19 = scalar_lea.sflag [#allocation5], 1
    %20 = vsyncpa %s19, 0
    loop: start=0, step=1, limit=4
    $region2: #{tpu_custom_call.1} parent=1 // loop_pre_header
      _
    $region3: #{tpu_custom_call.1} parent=1 // loop_header
      %s22 = sphi 0, %s26
      %p23 = scmp.ge.s32.totalorder %s22, 4
      %s29 = sphi 0, %s41
      %s30 = sphi 0, %s37
      %s31 = sphi 0, %s29
      %s32 = sphi 0, %s30
      %s33 = sphi 0, %s31
      %s34 = sphi 0, %s32
      %s42 = sphi 0, %s42
      %s44 = sphi 0, %s42
      %s45 = sphi 0, %s44
      %s59 = sphi 0, %s45
      %s67 = sphi 0, %s69
      %s70 = sphi 0, %s67
      %s71 = sphi 0, %s70
      %s87 = sphi 0, %s71
      %s95 = sphi 0, %s97
      %s98 = sphi 0, %s95
      %s99 = sphi 0, %s98
      %s115 = sphi 0, %s99
      %s123 = sphi 0, %s125
      %s126 = sphi 0, %s123
      %s127 = sphi 0, %s126
      %s143 = sphi 0, %s127
      %s151 = sphi 0, %s153
      %s154 = sphi 0, %s151
      %s155 = sphi 0, %s154
      %s171 = sphi 0, %s155
      %s179 = sphi 0, %s181
      %s182 = sphi 0, %s179
      %s183 = sphi 0, %s182
      %s199 = sphi 0, %s183
      %s207 = sphi 0, %s209
      %s210 = sphi 0, %s207
      %s211 = sphi 0, %s210
      %s227 = sphi 0, %s211
    $region4: #{tpu_custom_call.1} parent=1 // loop_header_branch
      %25 = sbr.rel (%p23) target = $region8
    $region5: #{tpu_custom_call.1} parent=1 // loop_body
      %s27 = ssub.s32 %s22, 1
      %s28 = ssub.s32 %s22, 2
      %s35 = sadd.s32 1, %s30
      %p36 = scmp.ge.s32.totalorder %s35, 1
      %s37 = scalar_select %p36, 0, %s35
      %s38 = sadd.s32 1, %s29
      %s39 = scalar_select %p36, %s38, %s29
      %p40 = scmp.ge.s32.totalorder %s39, 2
      %s41 = scalar_select %p40, 0, %s39
      %s43 = sadd.s32 %s42, 1
      %p46 = scmp.eq.s32.totalorder %s22, 1
      %p47 = scmp.ne.s32.totalorder %s42, %s44
      %p48 = scmp.eq.s32.totalorder %s22, 0
      %p49 = por %p47, %p48
      %p50 = scmp.ne.s32.totalorder %s42, %s44
      %p51 = scmp.eq.s32.totalorder %s27, 1
      %p52 = por %p50, %p51
      %p53 = scmp.ne.s32.totalorder %s44, %s45
      %p54 = scmp.eq.s32.totalorder %s27, 0
      %p55 = por %p53, %p54
      %p56 = scmp.ne.s32.totalorder %s44, %s45
      %p57 = scmp.eq.s32.totalorder %s28, 1
      %p58 = por %p56, %p57
      %p60 = scmp.ne.s32.totalorder %s45, %s59
      %p61 = scmp.eq.s32.totalorder %s28, 0
      %p62 = por %p60, %p61
      %s63 = ssub.s32 %s29, %s41
      %s64 = ssub.s32 %s30, %s37
      %s65 = sor.u32 %s63, %s64
      %p66 = scmp.eq.s32.totalorder %s65, 0
      %s68 = sadd.s32 %s67, 1
      %s69 = scalar_select %p66, %s67, %s68
      %p72 = pneg %p66
      %p73 = scmp.eq.s32.totalorder %s22, 1
      %p74 = por %p72, %p73
      %p75 = scmp.ne.s32.totalorder %s67, %s70
      %p76 = scmp.eq.s32.totalorder %s22, 0
      %p77 = por %p75, %p76
      %p78 = scmp.ne.s32.totalorder %s67, %s70
      %p79 = scmp.eq.s32.totalorder %s27, 1
      %p80 = por %p78, %p79
      %p81 = scmp.ne.s32.totalorder %s70, %s71
      %p82 = scmp.eq.s32.totalorder %s27, 0
      %p83 = por %p81, %p82
      %p84 = scmp.ne.s32.totalorder %s70, %s71
      %p85 = scmp.eq.s32.totalorder %s28, 1
      %p86 = por %p84, %p85
      %p88 = scmp.ne.s32.totalorder %s71, %s87
      %p89 = scmp.eq.s32.totalorder %s28, 0
      %p90 = por %p88, %p89
      %s91 = ssub.s32 %s29, %s41
      %s92 = ssub.s32 %s30, %s37
      %s93 = sor.u32 %s91, %s92
      %p94 = scmp.eq.s32.totalorder %s93, 0
      %s96 = sadd.s32 %s95, 1
      %s97 = scalar_select %p94, %s95, %s96
      %p100 = pneg %p94
      %p101 = scmp.eq.s32.totalorder %s22, 1
      %p102 = por %p100, %p101
      %p103 = scmp.ne.s32.totalorder %s95, %s98
      %p104 = scmp.eq.s32.totalorder %s22, 0
      %p105 = por %p103, %p104
      %p106 = scmp.ne.s32.totalorder %s95, %s98
      %p107 = scmp.eq.s32.totalorder %s27, 1
      %p108 = por %p106, %p107
      %p109 = scmp.ne.s32.totalorder %s98, %s99
      %p110 = scmp.eq.s32.totalorder %s27, 0
      %p111 = por %p109, %p110
      %p112 = scmp.ne.s32.totalorder %s98, %s99
      %p113 = scmp.eq.s32.totalorder %s28, 1
      %p114 = por %p112, %p113
      %p116 = scmp.ne.s32.totalorder %s99, %s115
      %p117 = scmp.eq.s32.totalorder %s28, 0
      %p118 = por %p116, %p117
      %s119 = ssub.s32 %s29, %s41
      %s120 = ssub.s32 %s30, %s37
      %s121 = sor.u32 %s119, %s120
      %p122 = scmp.eq.s32.totalorder %s121, 0
      %s124 = sadd.s32 %s123, 1
      %s125 = scalar_select %p122, %s123, %s124
      %p128 = pneg %p122
      %p129 = scmp.eq.s32.totalorder %s22, 1
      %p130 = por %p128, %p129
      %p131 = scmp.ne.s32.totalorder %s123, %s126
      %p132 = scmp.eq.s32.totalorder %s22, 0
      %p133 = por %p131, %p132
      %p134 = scmp.ne.s32.totalorder %s123, %s126
      %p135 = scmp.eq.s32.totalorder %s27, 1
      %p136 = por %p134, %p135
      %p137 = scmp.ne.s32.totalorder %s126, %s127
      %p138 = scmp.eq.s32.totalorder %s27, 0
      %p139 = por %p137, %p138
      %p140 = scmp.ne.s32.totalorder %s126, %s127
      %p141 = scmp.eq.s32.totalorder %s28, 1
      %p142 = por %p140, %p141
      %p144 = scmp.ne.s32.totalorder %s127, %s143
      %p145 = scmp.eq.s32.totalorder %s28, 0
      %p146 = por %p144, %p145
      %s147 = ssub.s32 %s29, %s41
      %s148 = ssub.s32 %s30, %s37
      %s149 = sor.u32 %s147, %s148
      %p150 = scmp.eq.s32.totalorder %s149, 0
      %s152 = sadd.s32 %s151, 1
      %s153 = scalar_select %p150, %s151, %s152
      %p156 = pneg %p150
      %p157 = scmp.eq.s32.totalorder %s22, 1
      %p158 = por %p156, %p157
      %p159 = scmp.ne.s32.totalorder %s151, %s154
      %p160 = scmp.eq.s32.totalorder %s22, 0
      %p161 = por %p159, %p160
      %p162 = scmp.ne.s32.totalorder %s151, %s154
      %p163 = scmp.eq.s32.totalorder %s27, 1
      %p164 = por %p162, %p163
      %p165 = scmp.ne.s32.totalorder %s154, %s155
      %p166 = scmp.eq.s32.totalorder %s27, 0
      %p167 = por %p165, %p166
      %p168 = scmp.ne.s32.totalorder %s154, %s155
      %p169 = scmp.eq.s32.totalorder %s28, 1
      %p170 = por %p168, %p169
      %p172 = scmp.ne.s32.totalorder %s155, %s171
      %p173 = scmp.eq.s32.totalorder %s28, 0
      %p174 = por %p172, %p173
      %s175 = ssub.s32 %s29, %s41
      %s176 = ssub.s32 %s30, %s37
      %s177 = sor.u32 %s175, %s176
      %p178 = scmp.eq.s32.totalorder %s177, 0
      %s180 = sadd.s32 %s179, 1
      %s181 = scalar_select %p178, %s179, %s180
      %p184 = pneg %p178
      %p185 = scmp.eq.s32.totalorder %s22, 1
      %p186 = por %p184, %p185
      %p187 = scmp.ne.s32.totalorder %s179, %s182
      %p188 = scmp.eq.s32.totalorder %s22, 0
      %p189 = por %p187, %p188
      %p190 = scmp.ne.s32.totalorder %s179, %s182
      %p191 = scmp.eq.s32.totalorder %s27, 1
      %p192 = por %p190, %p191
      %p193 = scmp.ne.s32.totalorder %s182, %s183
      %p194 = scmp.eq.s32.totalorder %s27, 0
      %p195 = por %p193, %p194
      %p196 = scmp.ne.s32.totalorder %s182, %s183
      %p197 = scmp.eq.s32.totalorder %s28, 1
      %p198 = por %p196, %p197
      %p200 = scmp.ne.s32.totalorder %s183, %s199
      %p201 = scmp.eq.s32.totalorder %s28, 0
      %p202 = por %p200, %p201
      %s203 = ssub.s32 %s29, %s41
      %s204 = ssub.s32 %s30, %s37
      %s205 = sor.u32 %s203, %s204
      %p206 = scmp.eq.s32.totalorder %s205, 0
      %s208 = sadd.s32 %s207, 1
      %s209 = scalar_select %p206, %s207, %s208
      %p212 = pneg %p206
      %p213 = scmp.eq.s32.totalorder %s22, 1
      %p214 = por %p212, %p213
      %p215 = scmp.ne.s32.totalorder %s207, %s210
      %p216 = scmp.eq.s32.totalorder %s22, 0
      %p217 = por %p215, %p216
      %p218 = scmp.ne.s32.totalorder %s207, %s210
      %p219 = scmp.eq.s32.totalorder %s27, 1
      %p220 = por %p218, %p219
      %p221 = scmp.ne.s32.totalorder %s210, %s211
      %p222 = scmp.eq.s32.totalorder %s27, 0
      %p223 = por %p221, %p222
      %p224 = scmp.ne.s32.totalorder %s210, %s211
      %p225 = scmp.eq.s32.totalorder %s28, 1
      %p226 = por %p224, %p225
      %p228 = scmp.ne.s32.totalorder %s211, %s227
      %p229 = scmp.eq.s32.totalorder %s28, 0
      %p230 = por %p228, %p229
      %p231 = scmp.le.s32.totalorder 1, %s22
      %p232 = scmp.lt.s32.totalorder %s22, 3
      %p233 = pnand %p231, %p232
      %p234 = pneg %p233
      // Predicated region
      $region9: #{tpu_custom_call.1} parent=5 // pred_check
        _
      $region10: #{tpu_custom_call.1} parent=5 // pred_check_branch
        %236 = sbr.rel (%p233) target = $region12
      $region11: #{tpu_custom_call.1} parent=5 // pred_region
        %s237 = ssub.s32 %s22, 1
        // Predicated region
        $region13: #{tpu_custom_call.1} parent=11 // pred_check
          %p238 = pneg %p55
        $region14: #{tpu_custom_call.1} parent=11 // pred_check_branch
          %240 = sbr.rel (%p238) target = $region16
        $region15: #{tpu_custom_call.1} parent=11 // pred_region
          _
        $region16: #{tpu_custom_call.1} parent=11 // pred_fallthru
          _
      $region12: #{tpu_custom_call.1} parent=5 // pred_fallthru
        _
      %p241 = scmp.lt.s32.totalorder %s22, 2
      // Predicated region
      $region17: #{tpu_custom_call.1} parent=5 // pred_check
        %p242 = pneg %p241
      $region18: #{tpu_custom_call.1} parent=5 // pred_check_branch
        %244 = sbr.rel (%p242) target = $region20
      $region19: #{tpu_custom_call.1} parent=5 // pred_region
        // Predicated region
        $region21: #{tpu_custom_call.1} parent=19 // pred_check
          %p245 = pneg %p77
        $region22: #{tpu_custom_call.1} parent=19 // pred_check_branch
          %247 = sbr.rel (%p245) target = $region24
        $region23: #{tpu_custom_call.1} parent=19 // pred_region
          %s248 = sand.u32 %s67, 1
          %s249 = scalar_lea.sflag [#allocation3], %s248
          %s250 = sand.u32 %s67, 1
          %s251 = smul.addr %s250, 64
          %s252 = scalar_lea.vmem [#allocation2], %s251
          %s253 = smul.u32 2, %s30
          %255 = vsyncadd %s249, 0
          %s256 = smul.addr %s29, 8
          %s257 = sadd.s32 %s253, %s256
          %s258 = smul.addr %s257, 8
          %s259 = scalar_lea.hbm %s1, %s258
          %s260 = sshll.u32 %s259, 4
          %s261 = int_to_ptr.hbm [resolvable:$true] %s260
          %s262 = sshll.u32 %s252, 4
          %s263 = int_to_ptr.vmem [resolvable:$true] %s262
          %268 = dma.hbm_to_vmem [thread:$0]  %s261, 1024, %s263, %s249, 256, 256, 16
        $region24: #{tpu_custom_call.1} parent=19 // pred_fallthru
          _
        // Predicated region
        $region25: #{tpu_custom_call.1} parent=19 // pred_check
          %p269 = pneg %p105
        $region26: #{tpu_custom_call.1} parent=19 // pred_check_branch
          %271 = sbr.rel (%p269) target = $region28
        $region27: #{tpu_custom_call.1} parent=19 // pred_region
          %s272 = smul.u32 2, %s30
          %p273 = scmp.lt.s32.totalorder %s29, 1
          %s274 = scalar_select %p273, %s29, 1
          %p275 = scmp.lt.s32.totalorder %s272, 1
          %s276 = scalar_select %p275, %s272, 1
          %s277 = smul.addr %s274, 2
          %s278 = sadd.s32 %s276, %s277
          %s279 = smul.addr %s278, 2
          %s280 = scalar_lea.vmem %s2, %s279
          %s281 = smul.u32 2, %s30
        $region28: #{tpu_custom_call.1} parent=19 // pred_fallthru
          _
        // Predicated region
        $region29: #{tpu_custom_call.1} parent=19 // pred_check
          %p282 = pneg %p133
        $region30: #{tpu_custom_call.1} parent=19 // pred_check_branch
          %284 = sbr.rel (%p282) target = $region32
        $region31: #{tpu_custom_call.1} parent=19 // pred_region
          %s285 = smul.u32 2, %s30
          %p286 = scmp.lt.s32.totalorder %s29, 1
          %s287 = scalar_select %p286, %s29, 1
          %p288 = scmp.lt.s32.totalorder %s285, 1
          %s289 = scalar_select %p288, %s285, 1
          %s290 = smul.addr %s287, 4
          %s291 = sadd.s32 %s289, %s290
          %s292 = smul.addr %s291, 8
          %s293 = scalar_lea.vmem %s3, %s292
          %s294 = smul.u32 2, %s30
        $region32: #{tpu_custom_call.1} parent=19 // pred_fallthru
          _
      $region20: #{tpu_custom_call.1} parent=5 // pred_fallthru
        _
      %p295 = scmp.le.s32.totalorder 1, %s22
      %p296 = scmp.lt.s32.totalorder %s22, 3
      %p297 = pnand %p295, %p296
      %p298 = pneg %p297
      // Predicated region
      $region33: #{tpu_custom_call.1} parent=5 // pred_check
        _
      $region34: #{tpu_custom_call.1} parent=5 // pred_check_branch
        %300 = sbr.rel (%p297) target = $region36
      $region35: #{tpu_custom_call.1} parent=5 // pred_region
        %s301 = ssub.s32 %s22, 1
        %s302 = sand.u32 %s70, 1
        %s303 = scalar_lea.sflag [#allocation3], %s302
        %s304 = sand.u32 %s70, 1
        %s305 = smul.addr %s304, 64
        %s306 = scalar_lea.vmem [#allocation2], %s305
        // Predicated region
        $region37: #{tpu_custom_call.1} parent=35 // pred_check
          %p307 = pneg %p83
        $region38: #{tpu_custom_call.1} parent=35 // pred_check_branch
          %309 = sbr.rel (%p307) target = $region40
        $region39: #{tpu_custom_call.1} parent=35 // pred_region
          %311 = dma.done %s303, 1024
        $region40: #{tpu_custom_call.1} parent=35 // pred_fallthru
          _
        %p312 = pneg %p55
        %p313 = pneg %p52
        %s314 = sand.u32 %s70, 1
        %s315 = scalar_lea.sflag [#allocation3], %s314
        %s316 = sand.u32 %s70, 1
        %s317 = smul.addr %s316, 64
        %s318 = scalar_lea.vmem [#allocation2], %s317
        %p319 = pneg %p83
        %p320 = pneg %p80
        %s321 = smul.u32 2, %s32
        %p322 = scmp.lt.s32.totalorder %s31, 1
        %s323 = scalar_select %p322, %s31, 1
        %p324 = scmp.lt.s32.totalorder %s321, 1
        %s325 = scalar_select %p324, %s321, 1
        %s326 = smul.addr %s323, 2
        %s327 = sadd.s32 %s325, %s326
        %s328 = smul.addr %s327, 2
        %s329 = scalar_lea.vmem %s2, %s328
        %p330 = pneg %p111
        %p331 = pneg %p108
        %s332 = smul.u32 2, %s32
        %p333 = scmp.lt.s32.totalorder %s31, 1
        %s334 = scalar_select %p333, %s31, 1
        %p335 = scmp.lt.s32.totalorder %s332, 1
        %s336 = scalar_select %p335, %s332, 1
        %s337 = smul.addr %s334, 4
        %s338 = sadd.s32 %s336, %s337
        %s339 = smul.addr %s338, 8
        %s340 = scalar_lea.vmem %s3, %s339
        %p341 = pneg %p139
        %p342 = pneg %p136
        %p343 = pneg %p167
        %p344 = pneg %p164
        %s345 = smul.u32 2, %s32
        %p346 = scmp.lt.s32.totalorder %s31, 1
        %s347 = scalar_select %p346, %s31, 1
        %p348 = scmp.lt.s32.totalorder %s345, 1
        %s349 = scalar_select %p348, %s345, 1
        %s350 = smul.addr %s347, 4
        %s351 = sadd.s32 %s349, %s350
        %s352 = smul.addr %s351, 8
        %s353 = scalar_lea.vmem %s4, %s352
        %p354 = pneg %p195
        %p355 = pneg %p192
        %s356 = sand.u32 %s182, 1
        %s357 = scalar_lea.sflag [#allocation4], %s356
        %s358 = sand.u32 %s182, 1
        %s359 = smul.addr %s358, 4
        %s360 = scalar_lea.vmem [#allocation6], %s359
        %p361 = pneg %p223
        %p362 = pneg %p220
        %s363 = sand.u32 %s210, 1
        %s364 = scalar_lea.sflag [#allocation5], %s363
        %s365 = sand.u32 %s210, 1
        %s366 = smul.addr %s365, 128
        %s367 = scalar_lea.smem [#allocation7], %s366
        %s368 = smul.u32 2, %s32
        %s369 = smul.u32 2, %s32
        %p370 = scmp.lt.s32.totalorder %s31, 1
        %s371 = scalar_select %p370, %s31, 1
        %p372 = scmp.lt.s32.totalorder %s369, 1
        %s373 = scalar_select %p372, %s369, 1
        %s374 = smul.addr %s371, 2
        %s375 = sadd.s32 %s373, %s374
        %s376 = smul.addr %s375, 2
        %s377 = scalar_lea.vmem %s2, %s376
        %s378 = smul.u32 2, %s32
        %s379 = smul.u32 2, %s32
        %p380 = scmp.lt.s32.totalorder %s31, 1
        %s381 = scalar_select %p380, %s31, 1
        %p382 = scmp.lt.s32.totalorder %s379, 1
        %s383 = scalar_select %p382, %s379, 1
        %s384 = smul.addr %s381, 4
        %s385 = sadd.s32 %s383, %s384
        %s386 = smul.addr %s385, 8
        %s387 = scalar_lea.vmem %s3, %s386
        %s388 = smul.u32 2, %s32
        %s389 = smul.u32 2, %s32
        %p390 = scmp.lt.s32.totalorder %s31, 1
        %s391 = scalar_select %p390, %s31, 1
        %p392 = scmp.lt.s32.totalorder %s389, 1
        %s393 = scalar_select %p392, %s389, 1
        %s394 = smul.addr %s391, 4
        %s395 = sadd.s32 %s393, %s394
        %s396 = smul.addr %s395, 8
        %s397 = scalar_lea.vmem %s4, %s396
        %s398 = smul.u32 2, %s32
        %s399 = smul.u32 2, %s32
        %v400 = vld [vmem:[%s0] sm:$0xff]
        %v401 = vld [vmem:[%s0 + $0x8] sm:$0xff]
        %v402 = vld [vmem:[%s306] sm:$0xff]
        %v403 = vld [vmem:[%s306 + $0x8] sm:$0xff]
        %v404 = vld [vmem:[%s306 + $0x10] sm:$0xff]
        %v405 = vld [vmem:[%s306 + $0x18] sm:$0xff]
        %v406 = vld [vmem:[%s306 + $0x20] sm:$0xff]
        %v407 = vld [vmem:[%s306 + $0x28] sm:$0xff]
        %v408 = vld [vmem:[%s306 + $0x30] sm:$0xff]
        %v409 = vld [vmem:[%s306 + $0x38] sm:$0xff]
        %vm410 = vcmask 261120
        %v412 = vsel %vm410, %v400, 0
        %v415 = vsel %vm410, %v401, 0
        %417 = vmatpush.msra.mxu0 0.0
        %418 = vmatpush.msra.mxu0 0.0
        %419 = vmatpush.msra.mxu0 0.0
        %420 = vmatpush.msra.mxu0 0.0
        %421 = vmatpush.msra.mxu0 0.0
        %422 = vmatpush.msra.mxu0 0.0
        %423 = vmatpush.msra.mxu0 0.0
        %424 = vmatpush.msra.mxu0 0.0
        %425 = vmatpush.msra.mxu0 0.0
        %426 = vmatpush.msra.mxu0 0.0
        %427 = vmatpush.msra.mxu0 0.0
        %428 = vmatpush.msra.mxu0 0.0
        %v429 = vand.u32 %v408, 4294901760
        %430 = vmatpush.msra.mxu0 %v429
        %v431 = vand.u32 %v406, 4294901760
        %432 = vmatpush.msra.mxu0 %v431
        %v433 = vand.u32 %v404, 4294901760
        %434 = vmatpush.msra.mxu0 %v433
        %v435 = vand.u32 %v402, 4294901760
        %436 = vmatpush.msra.mxu0 %v435
        %v437 = vand.u32 %v412, 4294901760
        %v438 = vsub.f32 %v412, %v437
        %v439 = vand.u32 %v438, 4294901760
        %v440 = vsub.f32 %v438, %v439
        %v441 = vand.u32 %v440, 4294901760
        %442 = vmatmul.f32.gmra.mxu0 %v441
        %v443 = vpop.f32.mrf.mxu0
        %v444 = vadd.f32 0.0, %v443
        %v445 = vand.u32 %v415, 4294901760
        %v446 = vsub.f32 %v415, %v445
        %v447 = vand.u32 %v446, 4294901760
        %v448 = vsub.f32 %v446, %v447
        %v449 = vand.u32 %v448, 4294901760
        %450 = vmatmul.f32.gmra.mxu0 %v449
        %v451 = vpop.f32.mrf.mxu0
        %v452 = vadd.f32 0.0, %v451
        %453 = vdwg.mxu0
        %454 = vmatpush.msra.mxu0 0.0
        %455 = vmatpush.msra.mxu0 0.0
        %456 = vmatpush.msra.mxu0 0.0
        %457 = vmatpush.msra.mxu0 0.0
        %458 = vmatpush.msra.mxu0 0.0
        %459 = vmatpush.msra.mxu0 0.0
        %460 = vmatpush.msra.mxu0 0.0
        %461 = vmatpush.msra.mxu0 0.0
        %462 = vmatpush.msra.mxu0 0.0
        %463 = vmatpush.msra.mxu0 0.0
        %464 = vmatpush.msra.mxu0 0.0
        %465 = vmatpush.msra.mxu0 0.0
        %v466 = vand.u32 %v408, 4294901760
        %v467 = vsub.f32 %v408, %v466
        %v468 = vand.u32 %v467, 4294901760
        %v469 = vsub.f32 %v467, %v468
        %v470 = vand.u32 %v469, 4294901760
        %471 = vmatpush.msra.mxu0 %v470
        %v472 = vand.u32 %v406, 4294901760
        %v473 = vsub.f32 %v406, %v472
        %v474 = vand.u32 %v473, 4294901760
        %v475 = vsub.f32 %v473, %v474
        %v476 = vand.u32 %v475, 4294901760
        %477 = vmatpush.msra.mxu0 %v476
        %v478 = vand.u32 %v404, 4294901760
        %v479 = vsub.f32 %v404, %v478
        %v480 = vand.u32 %v479, 4294901760
        %v481 = vsub.f32 %v479, %v480
        %v482 = vand.u32 %v481, 4294901760
        %483 = vmatpush.msra.mxu0 %v482
        %v484 = vand.u32 %v402, 4294901760
        %v485 = vsub.f32 %v402, %v484
        %v486 = vand.u32 %v485, 4294901760
        %v487 = vsub.f32 %v485, %v486
        %v488 = vand.u32 %v487, 4294901760
        %489 = vmatpush.msra.mxu0 %v488
        %v490 = vand.u32 %v412, 4294901760
        %491 = vmatmul.f32.gmra.mxu0 %v490
        %v492 = vpop.f32.mrf.mxu0
        %v493 = vadd.f32 %v444, %v492
        %v494 = vand.u32 %v415, 4294901760
        %495 = vmatmul.f32.gmra.mxu0 %v494
        %v496 = vpop.f32.mrf.mxu0
        %v497 = vadd.f32 %v452, %v496
        %498 = vdwg.mxu0
        %499 = vmatpush.msra.mxu0 0.0
        %500 = vmatpush.msra.mxu0 0.0
        %501 = vmatpush.msra.mxu0 0.0
        %502 = vmatpush.msra.mxu0 0.0
        %503 = vmatpush.msra.mxu0 0.0
        %504 = vmatpush.msra.mxu0 0.0
        %505 = vmatpush.msra.mxu0 0.0
        %506 = vmatpush.msra.mxu0 0.0
        %507 = vmatpush.msra.mxu0 0.0
        %508 = vmatpush.msra.mxu0 0.0
        %509 = vmatpush.msra.mxu0 0.0
        %510 = vmatpush.msra.mxu0 0.0
        %v511 = vand.u32 %v408, 4294901760
        %v512 = vsub.f32 %v408, %v511
        %513 = vmatpush.msra.mxu0 %v512
        %v514 = vand.u32 %v406, 4294901760
        %v515 = vsub.f32 %v406, %v514
        %516 = vmatpush.msra.mxu0 %v515
        %v517 = vand.u32 %v404, 4294901760
        %v518 = vsub.f32 %v404, %v517
        %519 = vmatpush.msra.mxu0 %v518
        %v520 = vand.u32 %v402, 4294901760
        %v521 = vsub.f32 %v402, %v520
        %522 = vmatpush.msra.mxu0 %v521
        %v523 = vand.u32 %v412, 4294901760
        %v524 = vsub.f32 %v412, %v523
        %525 = vmatmul.f32.gmra.mxu0 %v524
        %v526 = vpop.f32.mrf.mxu0
        %v527 = vadd.f32 %v493, %v526
        %v528 = vand.u32 %v415, 4294901760
        %v529 = vsub.f32 %v415, %v528
        %530 = vmatmul.f32.gmra.mxu0 %v529
        %v531 = vpop.f32.mrf.mxu0
        %v532 = vadd.f32 %v497, %v531
        %533 = vdwg.mxu0
        %534 = vmatpush.msra.mxu0 0.0
        %535 = vmatpush.msra.mxu0 0.0
        %536 = vmatpush.msra.mxu0 0.0
        %537 = vmatpush.msra.mxu0 0.0
        %538 = vmatpush.msra.mxu0 0.0
        %539 = vmatpush.msra.mxu0 0.0
        %540 = vmatpush.msra.mxu0 0.0
        %541 = vmatpush.msra.mxu0 0.0
        %542 = vmatpush.msra.mxu0 0.0
        %543 = vmatpush.msra.mxu0 0.0
        %544 = vmatpush.msra.mxu0 0.0
        %545 = vmatpush.msra.mxu0 0.0
        %v546 = vand.u32 %v408, 4294901760
        %547 = vmatpush.msra.mxu0 %v546
        %v548 = vand.u32 %v406, 4294901760
        %549 = vmatpush.msra.mxu0 %v548
        %v550 = vand.u32 %v404, 4294901760
        %551 = vmatpush.msra.mxu0 %v550
        %v552 = vand.u32 %v402, 4294901760
        %553 = vmatpush.msra.mxu0 %v552
        %v554 = vand.u32 %v412, 4294901760
        %v555 = vsub.f32 %v412, %v554
        %v556 = vand.u32 %v555, 4294901760
        %557 = vmatmul.f32.gmra.mxu0 %v556
        %v558 = vpop.f32.mrf.mxu0
        %v559 = vadd.f32 %v527, %v558
        %v560 = vand.u32 %v415, 4294901760
        %v561 = vsub.f32 %v415, %v560
        %v562 = vand.u32 %v561, 4294901760
        %563 = vmatmul.f32.gmra.mxu0 %v562
        %v564 = vpop.f32.mrf.mxu0
        %v565 = vadd.f32 %v532, %v564
        %566 = vdwg.mxu0
        %567 = vmatpush.msra.mxu0 0.0
        %568 = vmatpush.msra.mxu0 0.0
        %569 = vmatpush.msra.mxu0 0.0
        %570 = vmatpush.msra.mxu0 0.0
        %571 = vmatpush.msra.mxu0 0.0
        %572 = vmatpush.msra.mxu0 0.0
        %573 = vmatpush.msra.mxu0 0.0
        %574 = vmatpush.msra.mxu0 0.0
        %575 = vmatpush.msra.mxu0 0.0
        %576 = vmatpush.msra.mxu0 0.0
        %577 = vmatpush.msra.mxu0 0.0
        %578 = vmatpush.msra.mxu0 0.0
        %v579 = vand.u32 %v408, 4294901760
        %v580 = vsub.f32 %v408, %v579
        %v581 = vand.u32 %v580, 4294901760
        %582 = vmatpush.msra.mxu0 %v581
        %v583 = vand.u32 %v406, 4294901760
        %v584 = vsub.f32 %v406, %v583
        %v585 = vand.u32 %v584, 4294901760
        %586 = vmatpush.msra.mxu0 %v585
        %v587 = vand.u32 %v404, 4294901760
        %v588 = vsub.f32 %v404, %v587
        %v589 = vand.u32 %v588, 4294901760
        %590 = vmatpush.msra.mxu0 %v589
        %v591 = vand.u32 %v402, 4294901760
        %v592 = vsub.f32 %v402, %v591
        %v593 = vand.u32 %v592, 4294901760
        %594 = vmatpush.msra.mxu0 %v593
        %v595 = vand.u32 %v412, 4294901760
        %596 = vmatmul.f32.gmra.mxu0 %v595
        %v597 = vpop.f32.mrf.mxu0
        %v598 = vadd.f32 %v559, %v597
        %v599 = vand.u32 %v415, 4294901760
        %600 = vmatmul.f32.gmra.mxu0 %v599
        %v601 = vpop.f32.mrf.mxu0
        %v602 = vadd.f32 %v565, %v601
        %603 = vdwg.mxu0
        %604 = vmatpush.msra.mxu0 0.0
        %605 = vmatpush.msra.mxu0 0.0
        %606 = vmatpush.msra.mxu0 0.0
        %607 = vmatpush.msra.mxu0 0.0
        %608 = vmatpush.msra.mxu0 0.0
        %609 = vmatpush.msra.mxu0 0.0
        %610 = vmatpush.msra.mxu0 0.0
        %611 = vmatpush.msra.mxu0 0.0
        %612 = vmatpush.msra.mxu0 0.0
        %613 = vmatpush.msra.mxu0 0.0
        %614 = vmatpush.msra.mxu0 0.0
        %615 = vmatpush.msra.mxu0 0.0
        %v616 = vand.u32 %v408, 4294901760
        %617 = vmatpush.msra.mxu0 %v616
        %v618 = vand.u32 %v406, 4294901760
        %619 = vmatpush.msra.mxu0 %v618
        %v620 = vand.u32 %v404, 4294901760
        %621 = vmatpush.msra.mxu0 %v620
        %v622 = vand.u32 %v402, 4294901760
        %623 = vmatpush.msra.mxu0 %v622
        %v624 = vand.u32 %v412, 4294901760
        %625 = vmatmul.f32.gmra.mxu0 %v624
        %v626 = vpop.f32.mrf.mxu0
        %v627 = vadd.f32 %v598, %v626
        %v628 = vand.u32 %v415, 4294901760
        %629 = vmatmul.f32.gmra.mxu0 %v628
        %v630 = vpop.f32.mrf.mxu0
        %v631 = vadd.f32 %v602, %v630
        %632 = vdwg.mxu0
        %633 = vmatpush.msra.mxu0 0.0
        %634 = vmatpush.msra.mxu0 0.0
        %635 = vmatpush.msra.mxu0 0.0
        %636 = vmatpush.msra.mxu0 0.0
        %637 = vmatpush.msra.mxu0 0.0
        %638 = vmatpush.msra.mxu0 0.0
        %639 = vmatpush.msra.mxu0 0.0
        %640 = vmatpush.msra.mxu0 0.0
        %641 = vmatpush.msra.mxu0 0.0
        %642 = vmatpush.msra.mxu0 0.0
        %643 = vmatpush.msra.mxu0 0.0
        %644 = vmatpush.msra.mxu0 0.0
        %v645 = vand.u32 %v409, 4294901760
        %646 = vmatpush.msra.mxu0 %v645
        %v647 = vand.u32 %v407, 4294901760
        %648 = vmatpush.msra.mxu0 %v647
        %v649 = vand.u32 %v405, 4294901760
        %650 = vmatpush.msra.mxu0 %v649
        %v651 = vand.u32 %v403, 4294901760
        %652 = vmatpush.msra.mxu0 %v651
        %v653 = vand.u32 %v412, 4294901760
        %v654 = vsub.f32 %v412, %v653
        %v655 = vand.u32 %v654, 4294901760
        %v656 = vsub.f32 %v654, %v655
        %v657 = vand.u32 %v656, 4294901760
        %658 = vmatmul.f32.gmra.mxu0 %v657
        %v659 = vpop.f32.mrf.mxu0
        %v660 = vadd.f32 0.0, %v659
        %v661 = vand.u32 %v415, 4294901760
        %v662 = vsub.f32 %v415, %v661
        %v663 = vand.u32 %v662, 4294901760
        %v664 = vsub.f32 %v662, %v663
        %v665 = vand.u32 %v664, 4294901760
        %666 = vmatmul.f32.gmra.mxu0 %v665
        %v667 = vpop.f32.mrf.mxu0
        %v668 = vadd.f32 0.0, %v667
        %669 = vdwg.mxu0
        %670 = vmatpush.msra.mxu0 0.0
        %671 = vmatpush.msra.mxu0 0.0
        %672 = vmatpush.msra.mxu0 0.0
        %673 = vmatpush.msra.mxu0 0.0
        %674 = vmatpush.msra.mxu0 0.0
        %675 = vmatpush.msra.mxu0 0.0
        %676 = vmatpush.msra.mxu0 0.0
        %677 = vmatpush.msra.mxu0 0.0
        %678 = vmatpush.msra.mxu0 0.0
        %679 = vmatpush.msra.mxu0 0.0
        %680 = vmatpush.msra.mxu0 0.0
        %681 = vmatpush.msra.mxu0 0.0
        %v682 = vand.u32 %v409, 4294901760
        %v683 = vsub.f32 %v409, %v682
        %v684 = vand.u32 %v683, 4294901760
        %v685 = vsub.f32 %v683, %v684
        %v686 = vand.u32 %v685, 4294901760
        %687 = vmatpush.msra.mxu0 %v686
        %v688 = vand.u32 %v407, 4294901760
        %v689 = vsub.f32 %v407, %v688
        %v690 = vand.u32 %v689, 4294901760
        %v691 = vsub.f32 %v689, %v690
        %v692 = vand.u32 %v691, 4294901760
        %693 = vmatpush.msra.mxu0 %v692
        %v694 = vand.u32 %v405, 4294901760
        %v695 = vsub.f32 %v405, %v694
        %v696 = vand.u32 %v695, 4294901760
        %v697 = vsub.f32 %v695, %v696
        %v698 = vand.u32 %v697, 4294901760
        %699 = vmatpush.msra.mxu0 %v698
        %v700 = vand.u32 %v403, 4294901760
        %v701 = vsub.f32 %v403, %v700
        %v702 = vand.u32 %v701, 4294901760
        %v703 = vsub.f32 %v701, %v702
        %v704 = vand.u32 %v703, 4294901760
        %705 = vmatpush.msra.mxu0 %v704
        %v706 = vand.u32 %v412, 4294901760
        %707 = vmatmul.f32.gmra.mxu0 %v706
        %v708 = vpop.f32.mrf.mxu0
        %v709 = vadd.f32 %v660, %v708
        %v710 = vand.u32 %v415, 4294901760
        %711 = vmatmul.f32.gmra.mxu0 %v710
        %v712 = vpop.f32.mrf.mxu0
        %v713 = vadd.f32 %v668, %v712
        %714 = vdwg.mxu0
        %715 = vmatpush.msra.mxu0 0.0
        %716 = vmatpush.msra.mxu0 0.0
        %717 = vmatpush.msra.mxu0 0.0
        %718 = vmatpush.msra.mxu0 0.0
        %719 = vmatpush.msra.mxu0 0.0
        %720 = vmatpush.msra.mxu0 0.0
        %721 = vmatpush.msra.mxu0 0.0
        %722 = vmatpush.msra.mxu0 0.0
        %723 = vmatpush.msra.mxu0 0.0
        %724 = vmatpush.msra.mxu0 0.0
        %725 = vmatpush.msra.mxu0 0.0
        %726 = vmatpush.msra.mxu0 0.0
        %v727 = vand.u32 %v409, 4294901760
        %v728 = vsub.f32 %v409, %v727
        %729 = vmatpush.msra.mxu0 %v728
        %v730 = vand.u32 %v407, 4294901760
        %v731 = vsub.f32 %v407, %v730
        %732 = vmatpush.msra.mxu0 %v731
        %v733 = vand.u32 %v405, 4294901760
        %v734 = vsub.f32 %v405, %v733
        %735 = vmatpush.msra.mxu0 %v734
        %v736 = vand.u32 %v403, 4294901760
        %v737 = vsub.f32 %v403, %v736
        %738 = vmatpush.msra.mxu0 %v737
        %v739 = vand.u32 %v412, 4294901760
        %v740 = vsub.f32 %v412, %v739
        %741 = vmatmul.f32.gmra.mxu0 %v740
        %v742 = vpop.f32.mrf.mxu0
        %v743 = vadd.f32 %v709, %v742
        %v744 = vand.u32 %v415, 4294901760
        %v745 = vsub.f32 %v415, %v744
        %746 = vmatmul.f32.gmra.mxu0 %v745
        %v747 = vpop.f32.mrf.mxu0
        %v748 = vadd.f32 %v713, %v747
        %749 = vdwg.mxu0
        %750 = vmatpush.msra.mxu0 0.0
        %751 = vmatpush.msra.mxu0 0.0
        %752 = vmatpush.msra.mxu0 0.0
        %753 = vmatpush.msra.mxu0 0.0
        %754 = vmatpush.msra.mxu0 0.0
        %755 = vmatpush.msra.mxu0 0.0
        %756 = vmatpush.msra.mxu0 0.0
        %757 = vmatpush.msra.mxu0 0.0
        %758 = vmatpush.msra.mxu0 0.0
        %759 = vmatpush.msra.mxu0 0.0
        %760 = vmatpush.msra.mxu0 0.0
        %761 = vmatpush.msra.mxu0 0.0
        %v762 = vand.u32 %v409, 4294901760
        %763 = vmatpush.msra.mxu0 %v762
        %v764 = vand.u32 %v407, 4294901760
        %765 = vmatpush.msra.mxu0 %v764
        %v766 = vand.u32 %v405, 4294901760
        %767 = vmatpush.msra.mxu0 %v766
        %v768 = vand.u32 %v403, 4294901760
        %769 = vmatpush.msra.mxu0 %v768
        %v770 = vand.u32 %v412, 4294901760
        %v771 = vsub.f32 %v412, %v770
        %v772 = vand.u32 %v771, 4294901760
        %773 = vmatmul.f32.gmra.mxu0 %v772
        %v774 = vpop.f32.mrf.mxu0
        %v775 = vadd.f32 %v743, %v774
        %v776 = vand.u32 %v415, 4294901760
        %v777 = vsub.f32 %v415, %v776
        %v778 = vand.u32 %v777, 4294901760
        %779 = vmatmul.f32.gmra.mxu0 %v778
        %v780 = vpop.f32.mrf.mxu0
        %v781 = vadd.f32 %v748, %v780
        %782 = vdwg.mxu0
        %783 = vmatpush.msra.mxu0 0.0
        %784 = vmatpush.msra.mxu0 0.0
        %785 = vmatpush.msra.mxu0 0.0
        %786 = vmatpush.msra.mxu0 0.0
        %787 = vmatpush.msra.mxu0 0.0
        %788 = vmatpush.msra.mxu0 0.0
        %789 = vmatpush.msra.mxu0 0.0
        %790 = vmatpush.msra.mxu0 0.0
        %791 = vmatpush.msra.mxu0 0.0
        %792 = vmatpush.msra.mxu0 0.0
        %793 = vmatpush.msra.mxu0 0.0
        %794 = vmatpush.msra.mxu0 0.0
        %v795 = vand.u32 %v409, 4294901760
        %v796 = vsub.f32 %v409, %v795
        %v797 = vand.u32 %v796, 4294901760
        %798 = vmatpush.msra.mxu0 %v797
        %v799 = vand.u32 %v407, 4294901760
        %v800 = vsub.f32 %v407, %v799
        %v801 = vand.u32 %v800, 4294901760
        %802 = vmatpush.msra.mxu0 %v801
        %v803 = vand.u32 %v405, 4294901760
        %v804 = vsub.f32 %v405, %v803
        %v805 = vand.u32 %v804, 4294901760
        %806 = vmatpush.msra.mxu0 %v805
        %v807 = vand.u32 %v403, 4294901760
        %v808 = vsub.f32 %v403, %v807
        %v809 = vand.u32 %v808, 4294901760
        %810 = vmatpush.msra.mxu0 %v809
        %v811 = vand.u32 %v412, 4294901760
        %812 = vmatmul.f32.gmra.mxu0 %v811
        %v813 = vpop.f32.mrf.mxu0
        %v814 = vadd.f32 %v775, %v813
        %v815 = vand.u32 %v415, 4294901760
        %816 = vmatmul.f32.gmra.mxu0 %v815
        %v817 = vpop.f32.mrf.mxu0
        %v818 = vadd.f32 %v781, %v817
        %819 = vdwg.mxu0
        %820 = vmatpush.msra.mxu0 0.0
        %821 = vmatpush.msra.mxu0 0.0
        %822 = vmatpush.msra.mxu0 0.0
        %823 = vmatpush.msra.mxu0 0.0
        %824 = vmatpush.msra.mxu0 0.0
        %825 = vmatpush.msra.mxu0 0.0
        %826 = vmatpush.msra.mxu0 0.0
        %827 = vmatpush.msra.mxu0 0.0
        %828 = vmatpush.msra.mxu0 0.0
        %829 = vmatpush.msra.mxu0 0.0
        %830 = vmatpush.msra.mxu0 0.0
        %831 = vmatpush.msra.mxu0 0.0
        %v832 = vand.u32 %v409, 4294901760
        %833 = vmatpush.msra.mxu0 %v832
        %v834 = vand.u32 %v407, 4294901760
        %835 = vmatpush.msra.mxu0 %v834
        %v836 = vand.u32 %v405, 4294901760
        %837 = vmatpush.msra.mxu0 %v836
        %v838 = vand.u32 %v403, 4294901760
        %839 = vmatpush.msra.mxu0 %v838
        %v840 = vand.u32 %v412, 4294901760
        %841 = vmatmul.f32.gmra.mxu0 %v840
        %v842 = vpop.f32.mrf.mxu0
        %v843 = vadd.f32 %v814, %v842
        %v844 = vand.u32 %v415, 4294901760
        %845 = vmatmul.f32.gmra.mxu0 %v844
        %v846 = vpop.f32.mrf.mxu0
        %v847 = vadd.f32 %v818, %v846
        %848 = vdwg.mxu0
        %v849 = vsub.f32 0.0, %v631
        %v850 = vsub.f32 0.0, %v847
        %v851 = vmul.f32 %v849, 1.442695
        %v852 = vpow.pop %v851
        %v853 = vmul.f32 %v850, 1.442695
        %v854 = vpow.pop %v853
        %v855 = vadd.f32 %v852, 1.0
        %v856 = vadd.f32 %v854, 1.0
        %v857 = vrcp.pop %v855
        %v858 = vmul.f32 %v855, %v857
        %v859 = vsub.f32 1.0, %v858
        %v860 = vmul.f32 %v857, %v859
        %v861 = vadd.f32 %v857, %v860
        %vm862 = vweird.f32 %v855
        %vm863 = vweird.f32 %v857
        %vm864 = vmor %vm862, %vm863
        %v865 = vsel %vm864, %v857, %v861
        %v866 = vand.u32 2147483647, %v855
        %vm867 = vcmp.eq.f32.partialorder %v866, 8.507059e+37
        %v868 = vand.u32 %v855, 2147483648
        %v869 = vor.u32 1.1754944e-38, %v868
        %v870 = vsel %vm867, %v869, %v865
        %v871 = vmul.f32 1.0, %v870
        %v872 = vrcp.pop %v856
        %v873 = vmul.f32 %v856, %v872
        %v874 = vsub.f32 1.0, %v873
        %v875 = vmul.f32 %v872, %v874
        %v876 = vadd.f32 %v872, %v875
        %vm877 = vweird.f32 %v856
        %vm878 = vweird.f32 %v872
        %vm879 = vmor %vm877, %vm878
        %v880 = vsel %vm879, %v872, %v876
        %v881 = vand.u32 2147483647, %v856
        %vm882 = vcmp.eq.f32.partialorder %v881, 8.507059e+37
        %v883 = vand.u32 %v856, 2147483648
        %v884 = vor.u32 1.1754944e-38, %v883
        %v885 = vsel %vm882, %v884, %v880
        %v886 = vmul.f32 1.0, %v885
        %887 = vst [vmem:[%s397] sm:$0xff] %v627
        %888 = vst [vmem:[%s397 + $0x8] sm:$0xff] %v843
        %889 = vst [vmem:[%s397 + $0x10] sm:$0x3f] %v631
        %890 = vst [vmem:[%s397 + $0x18] sm:$0x3f] %v847
        %893 = vst.sshfl [vmem:[#allocation1] sm:$0xff pattern:$0x73625140] %v871
        %894 = vst.sshfl [vmem:[#allocation1 + $0x8] sm:$0xff pattern:$0x73625140] %v886
        %s895 = scalar_lea.vmem [#allocation1], 3
        %v896 = vld [vmem:[%s895] ss:$4 sm:$0xff]
        %898 = vst [vmem:[%s360] sm:$0xf] %v896
        %v899 = vld [vmem:[%s377] sm:$0xf]
        %v900 = vunpack.c.l.bf16 %v899
        %902 = vst [vmem:[#allocation1] ss:$2 sm:$0xff] %v900
        %v903 = vld.sshfl [vmem:[#allocation1] sm:$0xff pattern:$0x75316420]
        %v904 = vld.sshfl [vmem:[#allocation1 + $0x8] sm:$0xff pattern:$0x75316420]
        %vm907 = vcmask 1041408
        %v908 = vsel %vm907, %v903, 0.0
        %v909 = vsel %vm907, %v904, 0.0
        %v910 = vadd.f32 %v908, %v909
        %911 = vadd.xlane.f32.xlu0 %v910
        %v912 = vpop.xlane.xlu0 %911
        %v913 = vrot.slane %v912, 4
        %v914 = vadd.f32 %v912, %v913
        %v915 = vrot.slane %v914, 2
        %v916 = vadd.f32 %v914, %v915
        %v917 = vrot.slane %v916, 1
        %v918 = vadd.f32 %v916, %v917
        %s919 = vtos %v918
        %920 = vst [vmem:[#allocation1] ss:$2 sm:$0xff] %v900
        %v921 = vld.sshfl [vmem:[#allocation1] sm:$0xff pattern:$0x75316420]
        %v922 = vld.sshfl [vmem:[#allocation1 + $0x8] sm:$0xff pattern:$0x75316420]
        %v923 = vrot.slane %v921, 2
        %v924 = vrot.slane %v922, 2
        %v927 = vsel %vm907, %v923, 0.0
        %v928 = vsel %vm907, %v924, 0.0
        %v929 = vadd.f32 %v927, %v928
        %930 = vadd.xlane.f32.xlu0 %v929
        %v931 = vpop.xlane.xlu0 %930
        %v932 = vrot.slane %v931, 4
        %v933 = vadd.f32 %v931, %v932
        %v934 = vrot.slane %v933, 2
        %v935 = vadd.f32 %v933, %v934
        %v936 = vrot.slane %v935, 1
        %v937 = vadd.f32 %v935, %v936
        %s938 = vtos %v937
        %v939 = vsub.f32 0.0, %v900
        %v940 = vadd.f32 %v871, 1e-06
        %v941 = vadd.f32 %v886, 1e-06
        %v942 = vlog2.pop %v940
        %v943 = vmul.f32 %v942, 0.6931472
        %v944 = vlog2.pop %v941
        %v945 = vmul.f32 %v944, 0.6931472
        %948 = vst.sshfl [vmem:[#allocation1] sm:$0xff pattern:$0x75316420] %v943
        %949 = vst.sshfl [vmem:[#allocation1 + $0x8] sm:$0xff pattern:$0x75316420] %v945
        %s950 = scalar_lea.vmem [#allocation1], 1
        %v951 = vld [vmem:[%s950] ss:$2 sm:$0xff]
        %v952 = vrot.slane %v951, 6
        %v953 = vrot.slane %v952, 4
        %v955 = vmul.f32 %v939, %v953
        %957 = vst [vmem:[#allocation1] ss:$2 sm:$0xff] %v955
        %v958 = vld.sshfl [vmem:[#allocation1] sm:$0xff pattern:$0x75316420]
        %v959 = vld.sshfl [vmem:[#allocation1 + $0x8] sm:$0xff pattern:$0x75316420]
        %v962 = vsel %vm907, %v958, 0.0
        %v963 = vsel %vm907, %v959, 0.0
        %v964 = vadd.f32 %v962, %v963
        %965 = vadd.xlane.f32.xlu0 %v964
        %v966 = vpop.xlane.xlu0 %965
        %v967 = vrot.slane %v966, 4
        %v968 = vadd.f32 %v966, %v967
        %v969 = vrot.slane %v968, 2
        %v970 = vadd.f32 %v968, %v969
        %v971 = vrot.slane %v970, 1
        %v972 = vadd.f32 %v970, %v971
        %s973 = vtos %v972
        %v974 = vsub.f32 1.0, %v871
        %v975 = vsub.f32 1.0, %v886
        %v976 = vadd.f32 %v974, 1e-06
        %v977 = vadd.f32 %v975, 1e-06
        %v978 = vlog2.pop %v976
        %v979 = vmul.f32 %v978, 0.6931472
        %v980 = vlog2.pop %v977
        %v981 = vmul.f32 %v980, 0.6931472
        %984 = vst.sshfl [vmem:[#allocation1] sm:$0xff pattern:$0x75316420] %v979
        %985 = vst.sshfl [vmem:[#allocation1 + $0x8] sm:$0xff pattern:$0x75316420] %v981
        %s986 = scalar_lea.vmem [#allocation1], 1
        %v987 = vld [vmem:[%s986] ss:$2 sm:$0xff]
        %v989 = vmul.f32 %v939, %v987
        %991 = vst [vmem:[#allocation1] ss:$2 sm:$0xff] %v989
        %v992 = vld.sshfl [vmem:[#allocation1] sm:$0xff pattern:$0x75316420]
        %v993 = vld.sshfl [vmem:[#allocation1 + $0x8] sm:$0xff pattern:$0x75316420]
        %v994 = vrot.slane %v992, 2
        %v995 = vrot.slane %v993, 2
        %v998 = vsel %vm907, %v994, 0.0
        %v999 = vsel %vm907, %v995, 0.0
        %v1000 = vadd.f32 %v998, %v999
        %1001 = vadd.xlane.f32.xlu0 %v1000
        %v1002 = vpop.xlane.xlu0 %1001
        %v1003 = vrot.slane %v1002, 4
        %v1004 = vadd.f32 %v1002, %v1003
        %v1005 = vrot.slane %v1004, 2
        %v1006 = vadd.f32 %v1004, %v1005
        %v1007 = vrot.slane %v1006, 1
        %v1008 = vadd.f32 %v1006, %v1007
        %s1009 = vtos %v1008
        %v1010 = vld [vmem:[%s387] sm:$0xff]
        %v1011 = vld [vmem:[%s387 + $0x8] sm:$0xff]
        %v1012 = vld [vmem:[%s387 + $0x10] sm:$0x3f]
        %v1013 = vld [vmem:[%s387 + $0x18] sm:$0x3f]
        %v1014 = vsub.f32 %v627, %v1010
        %v1015 = vsub.f32 %v843, %v1011
        %v1016 = vperm.slane %v900, 0
        %v1017 = vperm.slane %v900, 4
        %v1020 = vperm.slane %v1016, 0
        %v1021 = vperm.slane %v1017, 0
        %v1022 = vmul.f32 %v1014, %v1020
        %v1023 = vmul.f32 %v1015, %v1021
        %v1024 = vand.u32 2147483647, %v1022
        %v1025 = vand.u32 2147483647, %v1023
        %vm1026 = vcmp.lt.f32.partialorder %v1024, 0.11111111
        %vm1027 = vcmp.lt.f32.partialorder %v1025, 0.11111111
        %v1028 = vmul.f32 %v1022, %v1022
        %v1029 = vmul.f32 %v1023, %v1023
        %v1030 = vmul.f32 %v1028, 4.5
        %v1031 = vmul.f32 %v1029, 4.5
        %v1032 = vsub.f32 %v1024, 0.055555556
        %v1033 = vsub.f32 %v1025, 0.055555556
        %v1034 = vsel %vm1026, %v1030, %v1032
        %v1035 = vsel %vm1027, %v1031, %v1033
        %vm1036 = vcmask 1046528
        %v1037 = vsel %vm1036, %v1034, 0.0
        %v1038 = vsel %vm1036, %v1035, 0.0
        %v1039 = vadd.f32 %v1037, %v1038
        %1040 = vadd.xlane.f32.xlu0 %v1039
        %v1041 = vpop.xlane.xlu0 %1040
        %v1042 = vrot.slane %v1041, 4
        %v1043 = vadd.f32 %v1041, %v1042
        %v1044 = vrot.slane %v1043, 2
        %v1045 = vadd.f32 %v1043, %v1044
        %v1046 = vrot.slane %v1045, 1
        %v1047 = vadd.f32 %v1045, %v1046
        %s1048 = vtos %v1047
        %v1049 = vsub.f32 %v631, %v1012
        %v1050 = vsub.f32 %v847, %v1013
        %v1051 = vperm.slane %v900, 1
        %v1052 = vperm.slane %v900, 5
        %v1055 = vperm.slane %v1051, 1
        %v1056 = vperm.slane %v1052, 1
        %v1057 = vmul.f32 %v1014, %v1055
        %v1058 = vmul.f32 %v1015, %v1056
        %v1059 = vmul.f32 %v1049, %v1055
        %v1060 = vmul.f32 %v1050, %v1056
        %v1061 = vand.u32 2147483647, %v1057
        %v1062 = vand.u32 2147483647, %v1058
        %v1063 = vand.u32 2147483647, %v1059
        %v1064 = vand.u32 2147483647, %v1060
        %vm1065 = vcmp.lt.f32.partialorder %v1061, 0.11111111
        %vm1066 = vcmp.lt.f32.partialorder %v1062, 0.11111111
        %vm1067 = vcmp.lt.f32.partialorder %v1063, 0.11111111
        %vm1068 = vcmp.lt.f32.partialorder %v1064, 0.11111111
        %v1069 = vmul.f32 %v1057, %v1057
        %v1070 = vmul.f32 %v1058, %v1058
        %v1071 = vmul.f32 %v1059, %v1059
        %v1072 = vmul.f32 %v1060, %v1060
        %v1073 = vmul.f32 %v1069, 4.5
        %v1074 = vmul.f32 %v1070, 4.5
        %v1075 = vmul.f32 %v1071, 4.5
        %v1076 = vmul.f32 %v1072, 4.5
        %v1077 = vsub.f32 %v1061, 0.055555556
        %v1078 = vsub.f32 %v1062, 0.055555556
        %v1079 = vsub.f32 %v1063, 0.055555556
        %v1080 = vsub.f32 %v1064, 0.055555556
        %v1081 = vsel %vm1065, %v1073, %v1077
        %v1082 = vsel %vm1066, %v1074, %v1078
        %v1083 = vsel %vm1067, %v1075, %v1079
        %v1084 = vsel %vm1068, %v1076, %v1080
        %vm1089 = vcmask 1040384
        %v1090 = vrot.slane %v1081, 7
        %v1091 = vrot.slane %v1083, 7
        %v1092 = vsel %vm1089, %v1090, %v1091
        %v1093 = vrot.slane %v1082, 7
        %v1094 = vrot.slane %v1084, 7
        %v1095 = vsel %vm1089, %v1093, %v1094
        %v1098 = vsel %vm1036, %v1092, 0.0
        %v1099 = vsel %vm1036, %v1095, 0.0
        %v1100 = vadd.f32 %v1098, %v1099
        %1101 = vadd.xlane.f32.xlu0 %v1100
        %v1102 = vpop.xlane.xlu0 %1101
        %v1103 = vrot.slane %v1102, 4
        %v1104 = vadd.f32 %v1102, %v1103
        %v1105 = vrot.slane %v1104, 2
        %v1106 = vadd.f32 %v1104, %v1105
        %v1107 = vrot.slane %v1106, 1
        %v1108 = vadd.f32 %v1106, %v1107
        %s1109 = vtos %v1108
        %s1110 = sadd.f32 %s1048, %s1109
        %s1111 = scalar_lea.smem %s367, 0 [#allocation7]
        %1112 = sst [smem:[%s1111]] %s919
        %s1113 = scalar_lea.smem %s367, 1 [#allocation7]
        %1114 = sst [smem:[%s1113]] %s938
        %s1115 = scalar_lea.smem %s367, 2 [#allocation7]
        %1116 = sst [smem:[%s1115]] %s973
        %s1117 = scalar_lea.smem %s367, 3 [#allocation7]
        %1118 = sst [smem:[%s1117]] %s1009
        %s1119 = scalar_lea.smem %s367, 4 [#allocation7]
        %1120 = sst [smem:[%s1119]] %s1110
        %s1121 = smul.u32 2, %s32
        %p1122 = scmp.lt.s32.totalorder %s31, 1
        %s1123 = scalar_select %p1122, %s31, 1
        %p1124 = scmp.lt.s32.totalorder %s1121, 1
        %s1125 = scalar_select %p1124, %s1121, 1
        %s1126 = smul.addr %s1123, 4
        %s1127 = sadd.s32 %s1125, %s1126
        %s1128 = smul.addr %s1127, 8
        %s1129 = scalar_lea.vmem %s4, %s1128
        %s1130 = sand.u32 %s182, 1
        %s1131 = scalar_lea.sflag [#allocation4], %s1130
        %s1132 = sand.u32 %s182, 1
        %s1133 = smul.addr %s1132, 4
        %s1134 = scalar_lea.vmem [#allocation6], %s1133
        %s1135 = sand.u32 %s210, 1
        %s1136 = scalar_lea.sflag [#allocation5], %s1135
        %s1137 = sand.u32 %s210, 1
        %s1138 = smul.addr %s1137, 128
        %s1139 = scalar_lea.smem [#allocation7], %s1138
        // Predicated region
        $region41: #{tpu_custom_call.1} parent=35 // pred_check
          %p1140 = pneg %p164
        $region42: #{tpu_custom_call.1} parent=35 // pred_check_branch
          %1142 = sbr.rel (%p1140) target = $region44
        $region43: #{tpu_custom_call.1} parent=35 // pred_region
          %s1143 = smul.u32 2, %s32
        $region44: #{tpu_custom_call.1} parent=35 // pred_fallthru
          _
        // Predicated region
        $region45: #{tpu_custom_call.1} parent=35 // pred_check
          %p1144 = pneg %p192
        $region46: #{tpu_custom_call.1} parent=35 // pred_check_branch
          %1146 = sbr.rel (%p1144) target = $region48
        $region47: #{tpu_custom_call.1} parent=35 // pred_region
          %s1147 = smul.u32 2, %s32
          %1149 = vsyncadd %s1131, 0
          %s1150 = smul.addr %s31, 2
          %s1151 = sadd.s32 %s1147, %s1150
          %s1152 = smul.addr %s1151, 2
          %s1153 = scalar_lea.hbm %s5, %s1152
          %s1155 = sshll.u32 %s1134, 4
          %s1156 = int_to_ptr.vmem [resolvable:$true] %s1155
          %s1157 = sshll.u32 %s1153, 4
          %s1158 = int_to_ptr.hbm [resolvable:$true] %s1157
          %1160 = dma.vmem_to_hbm [thread:$0]  %s1156, 64, %s1158, %s1131
        $region48: #{tpu_custom_call.1} parent=35 // pred_fallthru
          _
        // Predicated region
        $region49: #{tpu_custom_call.1} parent=35 // pred_check
          %p1161 = pneg %p220
        $region50: #{tpu_custom_call.1} parent=35 // pred_check_branch
          %1163 = sbr.rel (%p1161) target = $region52
        $region51: #{tpu_custom_call.1} parent=35 // pred_region
          %1165 = vsyncadd %s1136, 0
          %s1166 = sadd.s32 %s32, %s31
          %s1167 = scalar_lea.hbm %s6, %s1166
          %s1169 = sshll.u32 %s1167, 4
          %s1170 = int_to_ptr.hbm [resolvable:$true] %s1169
          %1172 = dma.smem_to_hbm %s1139, 16, %s1170, %s1136
        $region52: #{tpu_custom_call.1} parent=35 // pred_fallthru
          _
      $region36: #{tpu_custom_call.1} parent=5 // pred_fallthru
        _
      %p1173 = scmp.le.s32.totalorder 2, %s22
      // Predicated region
      $region53: #{tpu_custom_call.1} parent=5 // pred_check
        %p1174 = pneg %p1173
      $region54: #{tpu_custom_call.1} parent=5 // pred_check_branch
        %1176 = sbr.rel (%p1174) target = $region56
      $region55: #{tpu_custom_call.1} parent=5 // pred_region
        %s1177 = ssub.s32 %s22, 2
        // Predicated region
        $region57: #{tpu_custom_call.1} parent=55 // pred_check
          %p1178 = pneg %p170
        $region58: #{tpu_custom_call.1} parent=55 // pred_check_branch
          %1180 = sbr.rel (%p1178) target = $region60
        $region59: #{tpu_custom_call.1} parent=55 // pred_region
          %s1181 = smul.u32 2, %s34
          %p1182 = scmp.lt.s32.totalorder %s33, 1
          %s1183 = scalar_select %p1182, %s33, 1
          %p1184 = scmp.lt.s32.totalorder %s1181, 1
          %s1185 = scalar_select %p1184, %s1181, 1
          %s1186 = smul.addr %s1183, 4
          %s1187 = sadd.s32 %s1185, %s1186
          %s1188 = smul.addr %s1187, 8
          %s1189 = scalar_lea.vmem %s4, %s1188
        $region60: #{tpu_custom_call.1} parent=55 // pred_fallthru
          _
        // Predicated region
        $region61: #{tpu_custom_call.1} parent=55 // pred_check
          %p1190 = pneg %p198
        $region62: #{tpu_custom_call.1} parent=55 // pred_check_branch
          %1192 = sbr.rel (%p1190) target = $region64
        $region63: #{tpu_custom_call.1} parent=55 // pred_region
          %s1193 = sand.u32 %s183, 1
          %s1194 = scalar_lea.sflag [#allocation4], %s1193
          %s1195 = sand.u32 %s183, 1
          %s1196 = smul.addr %s1195, 4
          %s1197 = scalar_lea.vmem [#allocation6], %s1196
          %1199 = dma.done %s1194, 64
        $region64: #{tpu_custom_call.1} parent=55 // pred_fallthru
          _
        // Predicated region
        $region65: #{tpu_custom_call.1} parent=55 // pred_check
          %p1200 = pneg %p226
        $region66: #{tpu_custom_call.1} parent=55 // pred_check_branch
          %1202 = sbr.rel (%p1200) target = $region68
        $region67: #{tpu_custom_call.1} parent=55 // pred_region
          %s1203 = sand.u32 %s211, 1
          %s1204 = scalar_lea.sflag [#allocation5], %s1203
          %s1205 = sand.u32 %s211, 1
          %s1206 = smul.addr %s1205, 128
          %s1207 = scalar_lea.smem [#allocation7], %s1206
          %1209 = dma.done %s1204, 16
        $region68: #{tpu_custom_call.1} parent=55 // pred_fallthru
          _
        %1210 = sfence
      $region56: #{tpu_custom_call.1} parent=5 // pred_fallthru
        _
    $region6: #{tpu_custom_call.1} parent=1 // loop_footer
      %s26 = sadd.s32 1, %s22
    $region7: #{tpu_custom_call.1} parent=1 // loop_footer_branch
      %21 = sbr.rel target = $region3
    $region8: #{tpu_custom_call.1} parent=1 // loop_exit
      _
    %1211 = vsyncpa [#allocation3], 1
    %s1212 = scalar_lea.sflag [#allocation3], 1
    %1213 = vsyncpa %s1212, 1
    %1214 = vsyncpa [#allocation4], 1
    %s1215 = scalar_lea.sflag [#allocation4], 1
    %1216 = vsyncpa %s1215, 1
    %1217 = vsyncpa [#allocation5], 1
    %s1218 = scalar_lea.sflag [#allocation5], 1
    %1219 = vsyncpa %s1218, 1

</llo_original>
